<compile_context>
chip_gen: v5e
topology: v5e:2x2
jax: 0.10.0
libtpu: 0.0.40
codegen_flags: <defaults>
</compile_context>

<pallas_src>
import numpy as np

import jax
import jax.numpy as jnp
from jax import lax
from jax.experimental import pallas as pl
from jax.experimental.pallas import tpu as pltpu


def _hswish(x):
    return x * jnp.clip(x + 3.0, 0.0, 6.0) * (1.0 / 6.0)


def _hsigmoid(x):
    return jnp.clip(x + 3.0, 0.0, 6.0) * (1.0 / 6.0)


def _rup(n, m):
    return (n + m - 1) // m * m


# --------------------------------------------------------------------------------
# Parameter folding + packing: BN scales and Hswish 1/6 factors are folded into the
# conv weights; everything is then packed into a single small f32 array so the
# kernel sees ONE parameter DMA stream.
# --------------------------------------------------------------------------------
def fold_and_pack(params):
    """Returns (packed, row_offsets, dims).

    Row layout of `packed` (all row offsets are multiples of 8 sublanes):
      [off_w1 : +E   , :Cin ]  w1f   (E, Cin)    1x1 expand,  BN1 scale folded
      [off_dw : +E   , :K*K ]  dwf   (E, K*K)    depthwise,   BN2 scale / 6 folded
      [off_f2 : +E   , :red ]  fc2T  (E, red)    SE fc2 (transposed)
      [off_f1 : +red , :E   ]  fc1T  (red, E)    SE fc1 (transposed)
      [off_w3 : +Oup , :E   ]  w3f   (Oup, E)    1x1 project, BN3 scale / 6 folded
      [off_b  : +rows, :3   ]  [b1 | b2 | b3]    BN biases as columns
    """
    (w1, s1, b1, dw, s2, b2, fc1, fc2, w3, s3, b3) = params
    K = dw.shape[0]
    Cin, E = w1.shape
    Oup = w3.shape[1]
    red = fc1.shape[1]

    w1f = (w1 * s1[None, :]).T                                   # (E, Cin)
    dwf = (dw * (s2 / 6.0)[None, None, :]).reshape(K * K, E).T   # (E, K*K)
    fc1T = fc1.T                                                 # (red, E)
    fc2T = fc2.T                                                 # (E, red)
    w3f = (w3 * (s3 / 6.0)[None, :]).T                           # (Oup, E)

    brows = max(E, Oup)
    bias = (jnp.zeros((brows, 3), jnp.float32)
            .at[:E, 0].set(b1).at[:E, 1].set(b2).at[:Oup, 2].set(b3))

    PW = max(Cin, E, K * K, 3)
    blocks, offs, r = [], {}, 0
    for name, arr in (("w1", w1f), ("dw", dwf), ("f2", fc2T),
                      ("f1", fc1T), ("w3", w3f), ("b", bias)):
        rows, cols = arr.shape
        blk = jnp.zeros((_rup(rows, 8), PW), jnp.float32).at[:rows, :cols].set(arr)
        offs[name] = r
        r += blk.shape[0]
        blocks.append(blk)
    packed = jnp.concatenate(blocks, axis=0)
    dims = dict(Cin=Cin, E=E, Oup=Oup, K=K, red=red)
    return packed, offs, dims


def build_tap_masks(NB, H, W, K):
    """(K*K, NB*H*W) f32 edge-validity masks for the rolled depthwise taps.

    Pixel index = img*H*W + h*W + w (image-major), so the junction between fused
    images behaves exactly like an extra top/bottom edge and is zeroed by the same
    row tests that handle the image border wrap-around of the rotation.
    """
    pad = (K - 1) // 2
    HW = H * W
    pidx = np.arange(NB * HW) % HW
    row, col = pidx // W, pidx % W
    masks = np.ones((K * K, NB * HW), np.float32)
    for ry in range(-pad, pad + 1):
        for rx in range(-pad, pad + 1):
            k = (ry + pad) * K + (rx + pad)
            valid = np.ones(NB * HW, bool)
            if ry < 0:
                valid &= row >= -ry
            if ry > 0:
                valid &= row < H - ry
            if rx < 0:
                valid &= col >= -rx
            if rx > 0:
                valid &= col < W - rx
            masks[k] = valid.astype(np.float32)
    return jnp.asarray(masks)


# --------------------------------------------------------------------------------
# Wrapper + kernel.
# --------------------------------------------------------------------------------
def mobile_bottleneck(x_nchw, params, *, images_per_block=None):
    """x_nchw: (B, Cin, H, W) float32. Returns (B, Oup, H, W) (NCHW, like PyTorch)."""
    B, Cin, H, W = x_nchw.shape
    packed, offs, dims = fold_and_pack(params)
    assert dims["Cin"] == Cin
    E, Oup, K, red = dims["E"], dims["Oup"], dims["K"], dims["red"]
    HW = H * W
    KK = K * K
    pad = (K - 1) // 2

    # Fuse all images into one grid step by default (best on single-TC v5e/v6e).
    # On v7x set images_per_block=1 -> grid=(B,) + "parallel" shards over the 2 TCs.
    NB = B if images_per_block is None else images_per_block
    assert B % NB == 0
    NP = NB * HW                                  # fused pixels on the lane axis

    masks = build_tap_masks(NB, H, W, K)          # (K*K, NP), host precomputed

    # Free reshape (no HBM transpose): NCHW -> (B, C, H*W); pixels on the lane axis.
    x = x_nchw.reshape(B, Cin, HW).astype(jnp.float32)

    o_w1, o_dw, o_f2 = offs["w1"], offs["dw"], offs["f2"]
    o_f1, o_w3, o_b = offs["f1"], offs["w3"], offs["b"]

    def kernel(x_ref, m_ref, p_ref, o_ref):
        # ---- fuse NB images along the lane axis: (Cin, NB*HW) ----
        if NB == 1:
            xcat = x_ref[0]
        else:
            xcat = jnp.concatenate([x_ref[b] for b in range(NB)], axis=1)

        # ---- packed parameters (single DMA stream; all slices static) ----
        w1f = p_ref[o_w1:o_w1 + E, 0:Cin]
        dwf = p_ref[o_dw:o_dw + E, 0:KK]
        fc2T = p_ref[o_f2:o_f2 + E, 0:red]
        fc1T = p_ref[o_f1:o_f1 + red, 0:E]
        w3f = p_ref[o_w3:o_w3 + Oup, 0:E]
        b1f = p_ref[o_b:o_b + E, 0:1]
        b2f = p_ref[o_b:o_b + E, 1:2]
        b3f = p_ref[o_b:o_b + Oup, 2:3]

        # ---- 1x1 expand conv (BN1 scale folded into w1f) ----              MXU
        t = jnp.dot(w1f, xcat, preferred_element_type=jnp.float32) + b1f
        # Hswish numerator only: t * relu6(t+3); the 1/6 is folded into dwf.
        a = t * jnp.clip(t + 3.0, 0.0, 6.0)                     # (E, NP)

        # ---- depthwise KxK conv, stride 1, 'same' (BN2 scale/6 folded) ----
        # Off-center taps: XLU lane rotation + host-precomputed edge mask.
        center = (KK - 1) // 2
        acc = a * dwf[:, center:center + 1]                     # center tap
        for ry in range(-pad, pad + 1):
            for rx in range(-pad, pad + 1):
                if ry == 0 and rx == 0:
                    continue
                k = (ry + pad) * K + (rx + pad)
                st = ry * W + rx                                # flattened-pixel shift
                tap = pltpu.roll(a, (-st) % NP, axis=1)
                acc = acc + tap * m_ref[k:k + 1, :] * dwf[:, k:k + 1]
        t5 = acc + b2f                                          # (E, NP) == BN2 out

        # ---- SE: per-image mean -> fc1 -> relu -> fc2 -> hsigmoid -> scale ----
        # One N=NB matmul pair per block instead of serial N=1 MXU round-trips.
        m = jnp.concatenate(
            [jnp.mean(t5[:, b * HW:(b + 1) * HW], axis=1, keepdims=True)
             for b in range(NB)], axis=1)                       # (E, NB)
        u = jnp.maximum(
            jnp.dot(fc1T, m, preferred_element_type=jnp.float32), 0.0)
        g = jnp.clip(
            jnp.dot(fc2T, u, preferred_element_type=jnp.float32) + 3.0,
            0.0, 6.0) * (1.0 / 6.0)                             # (E, NB) hsigmoid
        t6 = jnp.concatenate(
            [t5[:, b * HW:(b + 1) * HW] * g[:, b:b + 1] for b in range(NB)],
            axis=1)                                             # (E, NP)

        # ---- Hswish (1/6 folded into w3f) + 1x1 project (BN3 folded) + residual ----
        b_act = t6 * jnp.clip(t6 + 3.0, 0.0, 6.0)
        y = jnp.dot(w3f, b_act, preferred_element_type=jnp.float32) + b3f + xcat
        for b in range(NB):                                     # lane-dense stores
            o_ref[b] = y[:, b * HW:(b + 1) * HW].astype(o_ref.dtype)

    out = pl.pallas_call(
        kernel,
        out_shape=jax.ShapeDtypeStruct((B, Oup, HW), jnp.float32),
        grid_spec=pltpu.PrefetchScalarGridSpec(
            num_scalar_prefetch=0,
            grid=(B // NB,),
            in_specs=[
                pl.BlockSpec((NB, Cin, HW), lambda i: (i, 0, 0)),   # activations
                pl.BlockSpec(masks.shape, lambda i: (0, 0)),        # grid-invariant
                pl.BlockSpec(packed.shape, lambda i: (0, 0)),       # grid-invariant
            ],
            out_specs=pl.BlockSpec((NB, Oup, HW), lambda i: (i, 0, 0)),
        ),
        compiler_params=pltpu.CompilerParams(
            dimension_semantics=("parallel",)),
    )(x, masks, packed)

    # Free reshape back to NCHW.
    return out.reshape(B, Oup, H, W)


# --------------------------------------------------------------------------------
# Synthetic parameters (keys drawn on demand).
# --------------------------------------------------------------------------------
def make_params(key, inp, oup, exp, kernel, reduction=4, eps=1e-5):
    state = {"key": key}

    def draw(shape, scale=0.1, uniform=False):
        state["key"], sub = jax.random.split(state["key"])
        if uniform:
            return jax.random.uniform(sub, shape, dtype=jnp.float32)
        return scale * jax.random.normal(sub, shape, dtype=jnp.float32)

    def bn_fold(c):
        gamma = 1.0 + draw((c,))
        beta = draw((c,))
        mean = draw((c,))
        var = 0.5 + draw((c,), uniform=True)
        scale = gamma / jnp.sqrt(var + eps)
        bias = beta - mean * scale
        return scale, bias

    w1 = draw((inp, exp))                       # 1x1 expand (Cin -> E)
    s1, b1 = bn_fold(exp)
    dw = draw((kernel, kernel, exp))            # depthwise (K, K, E)
    s2, b2 = bn_fold(exp)
    fc1 = draw((exp, exp // reduction))         # SE fc1 (acts as y @ fc1)
    fc2 = draw((exp // reduction, exp))         # SE fc2 (acts as y @ fc2)
    w3 = draw((exp, oup))                       # 1x1 project (E -> Oup)
    s3, b3 = bn_fold(oup)
    return (w1, s1, b1, dw, s2, b2, fc1, fc2, w3, s3, b3)


# --------------------------------------------------------------------------------
# Pure-JAX NCHW reference (un-folded params) for verification.
# --------------------------------------------------------------------------------
def reference(x, params):
    (w1, s1, b1, dw, s2, b2, fc1, fc2, w3, s3, b3) = params
    K = dw.shape[0]
    E = w1.shape[1]

    h = jnp.einsum('bchw,ce->behw', x, w1)
    h = h * s1[None, :, None, None] + b1[None, :, None, None]
    h = _hswish(h)

    dw_hwio = dw.reshape(K, K, 1, E)
    h = lax.conv_general_dilated(
        h, dw_hwio, window_strides=(1, 1), padding='SAME',
        dimension_numbers=('NCHW', 'HWIO', 'NCHW'), feature_group_count=E)
    h = h * s2[None, :, None, None] + b2[None, :, None, None]

    y = jnp.mean(h, axis=(2, 3))                    # (B, E)
    y = jnp.maximum(y @ fc1, 0.0)
    y = _hsigmoid(y @ fc2)
    h = h * y[:, :, None, None]

    h = _hswish(h)
    out = jnp.einsum('behw,eo->bohw', h, w3)
    out = out * s3[None, :, None, None] + b3[None, :, None, None]
    return out + x


if __name__ == "__main__":
    # MobileBottleneck(inp=16, oup=16, kernel=3, stride=1, exp=32, se=True, nl='HS')
    B, Cin, H, W = 2, 16, 16, 16
    Oup, E, K = 16, 32, 3

    key = jax.random.PRNGKey(0)
    kx, kp = jax.random.split(key)
    x = jax.random.normal(kx, (B, Cin, H, W), dtype=jnp.float32)
    params = make_params(kp, Cin, Oup, E, K)

    out = jax.block_until_ready(mobile_bottleneck(x, params))
    ref = jax.block_until_ready(reference(x, params))

    assert out.shape == (B, Oup, H, W), out.shape
    err = float(jnp.max(jnp.abs(out - ref)))
    assert err < 1e-4, f"max abs err {err}"

    print("KERNEL_OK")
</pallas_src>

<mosaic_0001>
module attributes {stable_mosaic.version = 11 : i64} {
  func.func @kernel(%arg0: i32, %arg1: memref<2x16x256xf32, #tpu.memory_space<vmem>>, %arg2: memref<9x512xf32, #tpu.memory_space<vmem>>, %arg3: memref<152x32xf32, #tpu.memory_space<vmem>>, %arg4: memref<2x16x256xf32, #tpu.memory_space<vmem>>) attributes {dimension_semantics = [#tpu.dimension_semantics<parallel>], iteration_bounds = array<i64: 1>, scalar_prefetch = 0 : i64, scratch_operands = 0 : i64, tpu.core_type = #tpu.core_type<tc>, window_params = [{transform_indices = @transform_0, window_bounds = array<i64: 2, 16, 256>}, {pipeline_mode = #tpu.pipeline_mode<synchronous>, transform_indices = @transform_1, window_bounds = array<i64: 9, 512>}, {pipeline_mode = #tpu.pipeline_mode<synchronous>, transform_indices = @transform_2, window_bounds = array<i64: 152, 32>}, {transform_indices = @transform_3, window_bounds = array<i64: 2, 16, 256>}]} {
    %c0 = arith.constant 0 : index
    %c0_0 = arith.constant 0 : index
    %c0_1 = arith.constant 0 : index
    %0 = vector.load %arg1[%c0, %c0_0, %c0_1] : memref<2x16x256xf32, #tpu.memory_space<vmem>>, vector<1x16x256xf32>
    %1 = vector.shape_cast %0 : vector<1x16x256xf32> to vector<16x256xf32>
    %c1 = arith.constant 1 : index
    %c0_2 = arith.constant 0 : index
    %c0_3 = arith.constant 0 : index
    %2 = vector.load %arg1[%c1, %c0_2, %c0_3] : memref<2x16x256xf32, #tpu.memory_space<vmem>>, vector<1x16x256xf32>
    %3 = vector.shape_cast %2 : vector<1x16x256xf32> to vector<16x256xf32>
    %4 = tpu.concatenate %1, %3 in 1 : vector<16x256xf32>, vector<16x256xf32> -> vector<16x512xf32>
    %c0_4 = arith.constant 0 : index
    %c0_5 = arith.constant 0 : index
    %5 = vector.load %arg3[%c0_4, %c0_5] : memref<152x32xf32, #tpu.memory_space<vmem>>, vector<32x16xf32>
    %c32 = arith.constant 32 : index
    %c0_6 = arith.constant 0 : index
    %6 = vector.load %arg3[%c32, %c0_6] : memref<152x32xf32, #tpu.memory_space<vmem>>, vector<32x9xf32>
    %c64 = arith.constant 64 : index
    %c0_7 = arith.constant 0 : index
    %7 = vector.load %arg3[%c64, %c0_7] : memref<152x32xf32, #tpu.memory_space<vmem>>, vector<32x8xf32>
    %c96 = arith.constant 96 : index
    %c0_8 = arith.constant 0 : index
    %8 = vector.load %arg3[%c96, %c0_8] : memref<152x32xf32, #tpu.memory_space<vmem>>, vector<8x32xf32>
    %c104 = arith.constant 104 : index
    %c0_9 = arith.constant 0 : index
    %9 = vector.load %arg3[%c104, %c0_9] : memref<152x32xf32, #tpu.memory_space<vmem>>, vector<16x32xf32>
    %c120 = arith.constant 120 : index
    %c0_10 = arith.constant 0 : index
    %10 = vector.load %arg3[%c120, %c0_10] : memref<152x32xf32, #tpu.memory_space<vmem>>, vector<32x1xf32>
    %c120_11 = arith.constant 120 : index
    %c1_12 = arith.constant 1 : index
    %11 = vector.load %arg3[%c120_11, %c1_12] : memref<152x32xf32, #tpu.memory_space<vmem>>, vector<32x1xf32>
    %c120_13 = arith.constant 120 : index
    %c2 = arith.constant 2 : index
    %12 = vector.load %arg3[%c120_13, %c2] : memref<152x32xf32, #tpu.memory_space<vmem>>, vector<16x1xf32>
    %cst = arith.constant dense<0.000000e+00> : vector<32x512xf32>
    %13 = tpu.matmul %5, %4, %cst {dimension_numbers = #tpu.dot_dimension_numbers<[1], [0], [0], [1], [0, 0, 1, 1], [], []>} : vector<32x16xf32>, vector<16x512xf32>, vector<32x512xf32> -> vector<32x512xf32>
    %14 = vector.broadcast %10 : vector<32x1xf32> to vector<32x512xf32>
    %15 = arith.addf %13, %14 : vector<32x512xf32>
    %cst_14 = arith.constant 3.000000e+00 : f32
    %16 = vector.broadcast %cst_14 : f32 to vector<32x512xf32>
    %17 = arith.addf %15, %16 : vector<32x512xf32>
    %cst_15 = arith.constant 0.000000e+00 : f32
    %cst_16 = arith.constant 6.000000e+00 : f32
    %18 = vector.broadcast %cst_15 : f32 to vector<32x512xf32>
    %19 = arith.maximumf %18, %17 : vector<32x512xf32>
    %20 = vector.broadcast %cst_16 : f32 to vector<32x512xf32>
    %21 = arith.minimumf %20, %19 : vector<32x512xf32>
    %22 = arith.mulf %15, %21 : vector<32x512xf32>
    %23 = vector.extract_strided_slice %6 {offsets = [0, 4], sizes = [32, 1], strides = [1, 1]} : vector<32x9xf32> to vector<32x1xf32>
    %24 = vector.broadcast %23 : vector<32x1xf32> to vector<32x512xf32>
    %25 = arith.mulf %22, %24 : vector<32x512xf32>
    %c17_i32 = arith.constant 17 : i32
    %26 = tpu.dynamic_rotate %22 by %c17_i32 dim 1 : vector<32x512xf32>, i32 -> vector<32x512xf32>
    %c0_17 = arith.constant 0 : index
    %c0_18 = arith.constant 0 : index
    %27 = vector.load %arg2[%c0_17, %c0_18] : memref<9x512xf32, #tpu.memory_space<vmem>>, vector<1x512xf32>
    %28 = vector.broadcast %27 : vector<1x512xf32> to vector<32x512xf32>
    %29 = arith.mulf %26, %28 : vector<32x512xf32>
    %30 = vector.extract_strided_slice %6 {offsets = [0, 0], sizes = [32, 1], strides = [1, 1]} : vector<32x9xf32> to vector<32x1xf32>
    %31 = vector.broadcast %30 : vector<32x1xf32> to vector<32x512xf32>
    %32 = arith.mulf %29, %31 : vector<32x512xf32>
    %33 = arith.addf %25, %32 : vector<32x512xf32>
    %c16_i32 = arith.constant 16 : i32
    %34 = tpu.dynamic_rotate %22 by %c16_i32 dim 1 : vector<32x512xf32>, i32 -> vector<32x512xf32>
    %c1_19 = arith.constant 1 : index
    %c0_20 = arith.constant 0 : index
    %35 = vector.load %arg2[%c1_19, %c0_20] : memref<9x512xf32, #tpu.memory_space<vmem>>, vector<1x512xf32>
    %36 = vector.broadcast %35 : vector<1x512xf32> to vector<32x512xf32>
    %37 = arith.mulf %34, %36 : vector<32x512xf32>
    %38 = vector.extract_strided_slice %6 {offsets = [0, 1], sizes = [32, 1], strides = [1, 1]} : vector<32x9xf32> to vector<32x1xf32>
    %39 = vector.broadcast %38 : vector<32x1xf32> to vector<32x512xf32>
    %40 = arith.mulf %37, %39 : vector<32x512xf32>
    %41 = arith.addf %33, %40 : vector<32x512xf32>
    %c15_i32 = arith.constant 15 : i32
    %42 = tpu.dynamic_rotate %22 by %c15_i32 dim 1 : vector<32x512xf32>, i32 -> vector<32x512xf32>
    %c2_21 = arith.constant 2 : index
    %c0_22 = arith.constant 0 : index
    %43 = vector.load %arg2[%c2_21, %c0_22] : memref<9x512xf32, #tpu.memory_space<vmem>>, vector<1x512xf32>
    %44 = vector.broadcast %43 : vector<1x512xf32> to vector<32x512xf32>
    %45 = arith.mulf %42, %44 : vector<32x512xf32>
    %46 = vector.extract_strided_slice %6 {offsets = [0, 2], sizes = [32, 1], strides = [1, 1]} : vector<32x9xf32> to vector<32x1xf32>
    %47 = vector.broadcast %46 : vector<32x1xf32> to vector<32x512xf32>
    %48 = arith.mulf %45, %47 : vector<32x512xf32>
    %49 = arith.addf %41, %48 : vector<32x512xf32>
    %c1_i32 = arith.constant 1 : i32
    %50 = tpu.dynamic_rotate %22 by %c1_i32 dim 1 : vector<32x512xf32>, i32 -> vector<32x512xf32>
    %c3 = arith.constant 3 : index
    %c0_23 = arith.constant 0 : index
    %51 = vector.load %arg2[%c3, %c0_23] : memref<9x512xf32, #tpu.memory_space<vmem>>, vector<1x512xf32>
    %52 = vector.broadcast %51 : vector<1x512xf32> to vector<32x512xf32>
    %53 = arith.mulf %50, %52 : vector<32x512xf32>
    %54 = vector.extract_strided_slice %6 {offsets = [0, 3], sizes = [32, 1], strides = [1, 1]} : vector<32x9xf32> to vector<32x1xf32>
    %55 = vector.broadcast %54 : vector<32x1xf32> to vector<32x512xf32>
    %56 = arith.mulf %53, %55 : vector<32x512xf32>
    %57 = arith.addf %49, %56 : vector<32x512xf32>
    %c511_i32 = arith.constant 511 : i32
    %58 = tpu.dynamic_rotate %22 by %c511_i32 dim 1 : vector<32x512xf32>, i32 -> vector<32x512xf32>
    %c5 = arith.constant 5 : index
    %c0_24 = arith.constant 0 : index
    %59 = vector.load %arg2[%c5, %c0_24] : memref<9x512xf32, #tpu.memory_space<vmem>>, vector<1x512xf32>
    %60 = vector.broadcast %59 : vector<1x512xf32> to vector<32x512xf32>
    %61 = arith.mulf %58, %60 : vector<32x512xf32>
    %62 = vector.extract_strided_slice %6 {offsets = [0, 5], sizes = [32, 1], strides = [1, 1]} : vector<32x9xf32> to vector<32x1xf32>
    %63 = vector.broadcast %62 : vector<32x1xf32> to vector<32x512xf32>
    %64 = arith.mulf %61, %63 : vector<32x512xf32>
    %65 = arith.addf %57, %64 : vector<32x512xf32>
    %c497_i32 = arith.constant 497 : i32
    %66 = tpu.dynamic_rotate %22 by %c497_i32 dim 1 : vector<32x512xf32>, i32 -> vector<32x512xf32>
    %c6 = arith.constant 6 : index
    %c0_25 = arith.constant 0 : index
    %67 = vector.load %arg2[%c6, %c0_25] : memref<9x512xf32, #tpu.memory_space<vmem>>, vector<1x512xf32>
    %68 = vector.broadcast %67 : vector<1x512xf32> to vector<32x512xf32>
    %69 = arith.mulf %66, %68 : vector<32x512xf32>
    %70 = vector.extract_strided_slice %6 {offsets = [0, 6], sizes = [32, 1], strides = [1, 1]} : vector<32x9xf32> to vector<32x1xf32>
    %71 = vector.broadcast %70 : vector<32x1xf32> to vector<32x512xf32>
    %72 = arith.mulf %69, %71 : vector<32x512xf32>
    %73 = arith.addf %65, %72 : vector<32x512xf32>
    %c496_i32 = arith.constant 496 : i32
    %74 = tpu.dynamic_rotate %22 by %c496_i32 dim 1 : vector<32x512xf32>, i32 -> vector<32x512xf32>
    %c7 = arith.constant 7 : index
    %c0_26 = arith.constant 0 : index
    %75 = vector.load %arg2[%c7, %c0_26] : memref<9x512xf32, #tpu.memory_space<vmem>>, vector<1x512xf32>
    %76 = vector.broadcast %75 : vector<1x512xf32> to vector<32x512xf32>
    %77 = arith.mulf %74, %76 : vector<32x512xf32>
    %78 = vector.extract_strided_slice %6 {offsets = [0, 7], sizes = [32, 1], strides = [1, 1]} : vector<32x9xf32> to vector<32x1xf32>
    %79 = vector.broadcast %78 : vector<32x1xf32> to vector<32x512xf32>
    %80 = arith.mulf %77, %79 : vector<32x512xf32>
    %81 = arith.addf %73, %80 : vector<32x512xf32>
    %c495_i32 = arith.constant 495 : i32
    %82 = tpu.dynamic_rotate %22 by %c495_i32 dim 1 : vector<32x512xf32>, i32 -> vector<32x512xf32>
    %c8 = arith.constant 8 : index
    %c0_27 = arith.constant 0 : index
    %83 = vector.load %arg2[%c8, %c0_27] : memref<9x512xf32, #tpu.memory_space<vmem>>, vector<1x512xf32>
    %84 = vector.broadcast %83 : vector<1x512xf32> to vector<32x512xf32>
    %85 = arith.mulf %82, %84 : vector<32x512xf32>
    %86 = vector.extract_strided_slice %6 {offsets = [0, 8], sizes = [32, 1], strides = [1, 1]} : vector<32x9xf32> to vector<32x1xf32>
    %87 = vector.broadcast %86 : vector<32x1xf32> to vector<32x512xf32>
    %88 = arith.mulf %85, %87 : vector<32x512xf32>
    %89 = arith.addf %81, %88 : vector<32x512xf32>
    %90 = vector.broadcast %11 : vector<32x1xf32> to vector<32x512xf32>
    %91 = arith.addf %89, %90 : vector<32x512xf32>
    %92 = vector.extract_strided_slice %91 {offsets = [0, 0], sizes = [32, 256], strides = [1, 1]} : vector<32x512xf32> to vector<32x256xf32>
    %cst_28 = arith.constant dense<0.000000e+00> : vector<32xf32>
    %93 = vector.multi_reduction <add>, %92, %cst_28 [1] : vector<32x256xf32> to vector<32xf32>
    %94 = vector.shape_cast %93 : vector<32xf32> to vector<32x1xf32>
    %cst_29 = arith.constant 2.560000e+02 : f32
    %95 = vector.broadcast %cst_29 : f32 to vector<32x1xf32>
    %96 = arith.divf %94, %95 : vector<32x1xf32>
    %97 = vector.extract_strided_slice %91 {offsets = [0, 256], sizes = [32, 256], strides = [1, 1]} : vector<32x512xf32> to vector<32x256xf32>
    %cst_30 = arith.constant dense<0.000000e+00> : vector<32xf32>
    %98 = vector.multi_reduction <add>, %97, %cst_30 [1] : vector<32x256xf32> to vector<32xf32>
    %99 = vector.shape_cast %98 : vector<32xf32> to vector<32x1xf32>
    %cst_31 = arith.constant 2.560000e+02 : f32
    %100 = vector.broadcast %cst_31 : f32 to vector<32x1xf32>
    %101 = arith.divf %99, %100 : vector<32x1xf32>
    %102 = tpu.concatenate %96, %101 in 1 : vector<32x1xf32>, vector<32x1xf32> -> vector<32x2xf32>
    %cst_32 = arith.constant dense<0.000000e+00> : vector<8x2xf32>
    %103 = tpu.matmul %8, %102, %cst_32 {dimension_numbers = #tpu.dot_dimension_numbers<[1], [0], [0], [1], [0, 0, 1, 1], [], []>} : vector<8x32xf32>, vector<32x2xf32>, vector<8x2xf32> -> vector<8x2xf32>
    %cst_33 = arith.constant 0.000000e+00 : f32
    %104 = vector.broadcast %cst_33 : f32 to vector<8x2xf32>
    %105 = arith.maximumf %103, %104 : vector<8x2xf32>
    %cst_34 = arith.constant dense<0.000000e+00> : vector<32x2xf32>
    %106 = tpu.matmul %7, %105, %cst_34 {dimension_numbers = #tpu.dot_dimension_numbers<[1], [0], [0], [1], [0, 0, 1, 1], [], []>} : vector<32x8xf32>, vector<8x2xf32>, vector<32x2xf32> -> vector<32x2xf32>
    %cst_35 = arith.constant 3.000000e+00 : f32
    %107 = vector.broadcast %cst_35 : f32 to vector<32x2xf32>
    %108 = arith.addf %106, %107 : vector<32x2xf32>
    %cst_36 = arith.constant 0.000000e+00 : f32
    %cst_37 = arith.constant 6.000000e+00 : f32
    %109 = vector.broadcast %cst_36 : f32 to vector<32x2xf32>
    %110 = arith.maximumf %109, %108 : vector<32x2xf32>
    %111 = vector.broadcast %cst_37 : f32 to vector<32x2xf32>
    %112 = arith.minimumf %111, %110 : vector<32x2xf32>
    %cst_38 = arith.constant 0.166666672 : f32
    %113 = vector.broadcast %cst_38 : f32 to vector<32x2xf32>
    %114 = arith.mulf %112, %113 : vector<32x2xf32>
    %115 = vector.extract_strided_slice %91 {offsets = [0, 0], sizes = [32, 256], strides = [1, 1]} : vector<32x512xf32> to vector<32x256xf32>
    %116 = vector.extract_strided_slice %114 {offsets = [0, 0], sizes = [32, 1], strides = [1, 1]} : vector<32x2xf32> to vector<32x1xf32>
    %117 = vector.broadcast %116 : vector<32x1xf32> to vector<32x256xf32>
    %118 = arith.mulf %115, %117 : vector<32x256xf32>
    %119 = vector.extract_strided_slice %91 {offsets = [0, 256], sizes = [32, 256], strides = [1, 1]} : vector<32x512xf32> to vector<32x256xf32>
    %120 = vector.extract_strided_slice %114 {offsets = [0, 1], sizes = [32, 1], strides = [1, 1]} : vector<32x2xf32> to vector<32x1xf32>
    %121 = vector.broadcast %120 : vector<32x1xf32> to vector<32x256xf32>
    %122 = arith.mulf %119, %121 : vector<32x256xf32>
    %123 = tpu.concatenate %118, %122 in 1 : vector<32x256xf32>, vector<32x256xf32> -> vector<32x512xf32>
    %cst_39 = arith.constant 3.000000e+00 : f32
    %124 = vector.broadcast %cst_39 : f32 to vector<32x512xf32>
    %125 = arith.addf %123, %124 : vector<32x512xf32>
    %cst_40 = arith.constant 0.000000e+00 : f32
    %cst_41 = arith.constant 6.000000e+00 : f32
    %126 = vector.broadcast %cst_40 : f32 to vector<32x512xf32>
    %127 = arith.maximumf %126, %125 : vector<32x512xf32>
    %128 = vector.broadcast %cst_41 : f32 to vector<32x512xf32>
    %129 = arith.minimumf %128, %127 : vector<32x512xf32>
    %130 = arith.mulf %123, %129 : vector<32x512xf32>
    %cst_42 = arith.constant dense<0.000000e+00> : vector<16x512xf32>
    %131 = tpu.matmul %9, %130, %cst_42 {dimension_numbers = #tpu.dot_dimension_numbers<[1], [0], [0], [1], [0, 0, 1, 1], [], []>} : vector<16x32xf32>, vector<32x512xf32>, vector<16x512xf32> -> vector<16x512xf32>
    %132 = vector.broadcast %12 : vector<16x1xf32> to vector<16x512xf32>
    %133 = arith.addf %131, %132 : vector<16x512xf32>
    %134 = arith.addf %133, %4 : vector<16x512xf32>
    %135 = vector.extract_strided_slice %134 {offsets = [0, 0], sizes = [16, 256], strides = [1, 1]} : vector<16x512xf32> to vector<16x256xf32>
    %c0_43 = arith.constant 0 : index
    %c0_44 = arith.constant 0 : index
    %c0_45 = arith.constant 0 : index
    %136 = vector.load %arg4[%c0_43, %c0_44, %c0_45] : memref<2x16x256xf32, #tpu.memory_space<vmem>>, vector<1x16x256xf32>
    %137 = vector.shape_cast %136 : vector<1x16x256xf32> to vector<16x256xf32>
    %138 = vector.shape_cast %135 : vector<16x256xf32> to vector<1x16x256xf32>
    tpu.vector_store %arg4[%c0_43, %c0_44, %c0_45], %138 {strides = array<i32>} : memref<2x16x256xf32, #tpu.memory_space<vmem>>, vector<1x16x256xf32>,
    %139 = vector.extract_strided_slice %134 {offsets = [0, 256], sizes = [16, 256], strides = [1, 1]} : vector<16x512xf32> to vector<16x256xf32>
    %c1_46 = arith.constant 1 : index
    %c0_47 = arith.constant 0 : index
    %c0_48 = arith.constant 0 : index
    %140 = vector.load %arg4[%c1_46, %c0_47, %c0_48] : memref<2x16x256xf32, #tpu.memory_space<vmem>>, vector<1x16x256xf32>
    %141 = vector.shape_cast %140 : vector<1x16x256xf32> to vector<16x256xf32>
    %142 = vector.shape_cast %139 : vector<16x256xf32> to vector<1x16x256xf32>
    tpu.vector_store %arg4[%c1_46, %c0_47, %c0_48], %142 {strides = array<i32>} : memref<2x16x256xf32, #tpu.memory_space<vmem>>, vector<1x16x256xf32>,
    return
  }
  func.func @transform_0(%arg0: i32) -> (i32, i32, i32) {
    %c0_i32 = arith.constant 0 : i32
    %c0_i32_0 = arith.constant 0 : i32
    %c0_i32_1 = arith.constant 0 : i32
    return %arg0, %c0_i32, %c0_i32_0 : i32, i32, i32
  }
  func.func @transform_1(%arg0: i32) -> (i32, i32) {
    %c0_i32 = arith.constant 0 : i32
    %c0_i32_0 = arith.constant 0 : i32
    %c0_i32_1 = arith.constant 0 : i32
    return %c0_i32, %c0_i32_0 : i32, i32
  }
  func.func @transform_2(%arg0: i32) -> (i32, i32) {
    %c0_i32 = arith.constant 0 : i32
    %c0_i32_0 = arith.constant 0 : i32
    %c0_i32_1 = arith.constant 0 : i32
    return %c0_i32, %c0_i32_0 : i32, i32
  }
  func.func @transform_3(%arg0: i32) -> (i32, i32, i32) {
    %c0_i32 = arith.constant 0 : i32
    %c0_i32_0 = arith.constant 0 : i32
    %c0_i32_1 = arith.constant 0 : i32
    return %arg0, %c0_i32, %c0_i32_0 : i32, i32, i32
  }
}

</mosaic_0001>

<llo_original>
// kernel: tpu_custom_call.1
$region0: #{tpu_custom_call.1}
  #allocation0 [shape = 'u32[]', space=smem, size = 0x4, offset = 0x4, fixed_abs, tag = 'smem constant byte address 0x4 - core index']
  #allocation1 [shape = 'u32[72,128]{1,0:T(1,128)}', space=vmem, size = 0x9000, scoped, tag = 'internal scratch']
  %s0 = inlined_call_operand.vmem [shape: f32[2,16,256], index: 0, kind: input, shape index: {}]
  %s1 = inlined_call_operand.vmem [shape: f32[9,512], index: 1, kind: input, shape index: {}]
  %s2 = inlined_call_operand.vmem [shape: f32[152,32], index: 2, kind: input, shape index: {}]
  %s3 = inlined_call_operand.hbm [shape: f32[2,16,256], index: 3, kind: output, shape index: {}]
  %s4 = sld [smem:[#allocation0]]
  $region22: #{tpu_custom_call.1} parent=0
    _
  %s6 = ssub.s32 1, %s4
  %s7 = scalar_select 0, %s6, %s4
  $region1: #{tpu_custom_call.1} parent=0
    #allocation2 [shape = 'u8[32768]{0}', space=vmem, size = 0x8000, scoped, tag = 'output window, operand 0, single buffered']
    #allocation3 [shape = 's32[1]{0}', space=sflag, size = 0x4, scoped, tag = 'scoped memory for tpu_custom_call.1']
    %8 = vsyncpa [#allocation3], 0
    // Predicated region
    $region2: #{tpu_custom_call.1} parent=1 // pred_check
      _
    $region3: #{tpu_custom_call.1} parent=1 // pred_check_branch
      %10 = sbr.rel (0) target = $region5
    $region4: #{tpu_custom_call.1} parent=1 // pred_region
      _
    $region5: #{tpu_custom_call.1} parent=1 // pred_fallthru
      _
    // Predicated region
    $region6: #{tpu_custom_call.1} parent=1 // pred_check
      _
    $region7: #{tpu_custom_call.1} parent=1 // pred_check_branch
      %12 = sbr.rel (0) target = $region9
    $region8: #{tpu_custom_call.1} parent=1 // pred_region
      _
    $region9: #{tpu_custom_call.1} parent=1 // pred_fallthru
      _
    // Predicated region
    $region10: #{tpu_custom_call.1} parent=1 // pred_check
      _
    $region11: #{tpu_custom_call.1} parent=1 // pred_check_branch
      %14 = sbr.rel (0) target = $region13
    $region12: #{tpu_custom_call.1} parent=1 // pred_region
      _
    $region13: #{tpu_custom_call.1} parent=1 // pred_fallthru
      _
    %v15 = vld [vmem:[%s0] sm:$0xff]
    %v16 = vld [vmem:[%s0 + $0x8] sm:$0xff]
    %v17 = vld [vmem:[%s0 + $0x10] sm:$0xff]
    %v18 = vld [vmem:[%s0 + $0x18] sm:$0xff]
    %s19 = scalar_lea.vmem %s0, 32
    %v20 = vld [vmem:[%s19] sm:$0xff]
    %v21 = vld [vmem:[%s19 + $0x8] sm:$0xff]
    %v22 = vld [vmem:[%s19 + $0x10] sm:$0xff]
    %v23 = vld [vmem:[%s19 + $0x18] sm:$0xff]
    %v24 = vld [vmem:[%s2] sm:$0xff]
    %v25 = vld [vmem:[%s2 + $0x8] sm:$0xff]
    %v26 = vld [vmem:[%s2 + $0x10] sm:$0xff]
    %v27 = vld [vmem:[%s2 + $0x18] sm:$0xff]
    %v28 = vld [vmem:[%s2 + $0x20] sm:$0xff]
    %v29 = vld [vmem:[%s2 + $0x28] sm:$0xff]
    %v30 = vld [vmem:[%s2 + $0x30] sm:$0xff]
    %v31 = vld [vmem:[%s2 + $0x38] sm:$0xff]
    %v32 = vld [vmem:[%s2 + $0x40] sm:$0xff]
    %v33 = vld [vmem:[%s2 + $0x48] sm:$0xff]
    %v34 = vld [vmem:[%s2 + $0x50] sm:$0xff]
    %v35 = vld [vmem:[%s2 + $0x58] sm:$0xff]
    %v36 = vld [vmem:[%s2 + $0x60] sm:$0xff]
    %v37 = vld [vmem:[%s2 + $0x68] sm:$0xff]
    %v38 = vld [vmem:[%s2 + $0x70] sm:$0xff]
    %v39 = vld [vmem:[%s2 + $0x78] sm:$0xff]
    %v40 = vld [vmem:[%s2 + $0x80] sm:$0xff]
    %v41 = vld [vmem:[%s2 + $0x88] sm:$0xff]
    %v42 = vld [vmem:[%s2 + $0x90] sm:$0xff]
    %44 = vset.pattern.permute.xlu0 0
    %45 = vperm.xlu0 %44, %v39
    %v46 = vpop.permute.xlu0 %45
    %49 = vset.pattern.permute.xlu0 0
    %50 = vperm.xlu0 %49, %v40
    %v51 = vpop.permute.xlu0 %50
    %54 = vset.pattern.permute.xlu0 0
    %55 = vperm.xlu0 %54, %v41
    %v56 = vpop.permute.xlu0 %55
    %59 = vset.pattern.permute.xlu0 0
    %60 = vperm.xlu0 %59, %v42
    %v61 = vpop.permute.xlu0 %60
    %vm63 = vcmask 130048
    %v65 = vsel %vm63, %v24, 0
    %v68 = vsel %vm63, %v25, 0
    %v71 = vsel %vm63, %v26, 0
    %v74 = vsel %vm63, %v27, 0
    %76 = vmatpush.msra.mxu0 0.0
    %77 = vmatpush.msra.mxu0 0.0
    %78 = vmatpush.msra.mxu0 0.0
    %79 = vmatpush.msra.mxu0 0.0
    %80 = vmatpush.msra.mxu0 0.0
    %81 = vmatpush.msra.mxu0 0.0
    %82 = vmatpush.msra.mxu0 0.0
    %83 = vmatpush.msra.mxu0 0.0
    %84 = vmatpush.msra.mxu0 0.0
    %85 = vmatpush.msra.mxu0 0.0
    %86 = vmatpush.msra.mxu0 0.0
    %87 = vmatpush.msra.mxu0 0.0
    %88 = vmatpush.msra.mxu0 0.0
    %89 = vmatpush.msra.mxu0 0.0
    %90 = vmatpush.msra.mxu0 %v17
    %91 = vmatpush.msra.mxu0 %v15
    %92 = vmatmul.f32.gmra.mxu0 %v65
    %v93 = vpop.f32.mrf.mxu0
    %v94 = vadd.f32 %v46, %v93
    %95 = vmatmul.f32.gmra.mxu0 %v68
    %v96 = vpop.f32.mrf.mxu0
    %v97 = vadd.f32 %v51, %v96
    %98 = vmatmul.f32.gmra.mxu0 %v71
    %v99 = vpop.f32.mrf.mxu0
    %v100 = vadd.f32 %v56, %v99
    %101 = vmatmul.f32.gmra.mxu0 %v74
    %v102 = vpop.f32.mrf.mxu0
    %v103 = vadd.f32 %v61, %v102
    %104 = vdwg.mxu0
    %105 = vmatpush.msra.mxu0 0.0
    %106 = vmatpush.msra.mxu0 0.0
    %107 = vmatpush.msra.mxu0 0.0
    %108 = vmatpush.msra.mxu0 0.0
    %109 = vmatpush.msra.mxu0 0.0
    %110 = vmatpush.msra.mxu0 0.0
    %111 = vmatpush.msra.mxu0 0.0
    %112 = vmatpush.msra.mxu0 0.0
    %113 = vmatpush.msra.mxu0 0.0
    %114 = vmatpush.msra.mxu0 0.0
    %115 = vmatpush.msra.mxu0 0.0
    %116 = vmatpush.msra.mxu0 0.0
    %117 = vmatpush.msra.mxu0 0.0
    %118 = vmatpush.msra.mxu0 0.0
    %119 = vmatpush.msra.mxu0 %v18
    %120 = vmatpush.msra.mxu0 %v16
    %121 = vmatmul.f32.gmra.mxu0 %v65
    %v122 = vpop.f32.mrf.mxu0
    %v123 = vadd.f32 %v46, %v122
    %124 = vmatmul.f32.gmra.mxu0 %v68
    %v125 = vpop.f32.mrf.mxu0
    %v126 = vadd.f32 %v51, %v125
    %127 = vmatmul.f32.gmra.mxu0 %v71
    %v128 = vpop.f32.mrf.mxu0
    %v129 = vadd.f32 %v56, %v128
    %130 = vmatmul.f32.gmra.mxu0 %v74
    %v131 = vpop.f32.mrf.mxu0
    %v132 = vadd.f32 %v61, %v131
    %133 = vdwg.mxu0
    %134 = vmatpush.msra.mxu0 0.0
    %135 = vmatpush.msra.mxu0 0.0
    %136 = vmatpush.msra.mxu0 0.0
    %137 = vmatpush.msra.mxu0 0.0
    %138 = vmatpush.msra.mxu0 0.0
    %139 = vmatpush.msra.mxu0 0.0
    %140 = vmatpush.msra.mxu0 0.0
    %141 = vmatpush.msra.mxu0 0.0
    %142 = vmatpush.msra.mxu0 0.0
    %143 = vmatpush.msra.mxu0 0.0
    %144 = vmatpush.msra.mxu0 0.0
    %145 = vmatpush.msra.mxu0 0.0
    %146 = vmatpush.msra.mxu0 0.0
    %147 = vmatpush.msra.mxu0 0.0
    %148 = vmatpush.msra.mxu0 %v22
    %149 = vmatpush.msra.mxu0 %v20
    %150 = vmatmul.f32.gmra.mxu0 %v65
    %v151 = vpop.f32.mrf.mxu0
    %v152 = vadd.f32 %v46, %v151
    %153 = vmatmul.f32.gmra.mxu0 %v68
    %v154 = vpop.f32.mrf.mxu0
    %v155 = vadd.f32 %v51, %v154
    %156 = vmatmul.f32.gmra.mxu0 %v71
    %v157 = vpop.f32.mrf.mxu0
    %v158 = vadd.f32 %v56, %v157
    %159 = vmatmul.f32.gmra.mxu0 %v74
    %v160 = vpop.f32.mrf.mxu0
    %v161 = vadd.f32 %v61, %v160
    %162 = vdwg.mxu0
    %163 = vmatpush.msra.mxu0 0.0
    %164 = vmatpush.msra.mxu0 0.0
    %165 = vmatpush.msra.mxu0 0.0
    %166 = vmatpush.msra.mxu0 0.0
    %167 = vmatpush.msra.mxu0 0.0
    %168 = vmatpush.msra.mxu0 0.0
    %169 = vmatpush.msra.mxu0 0.0
    %170 = vmatpush.msra.mxu0 0.0
    %171 = vmatpush.msra.mxu0 0.0
    %172 = vmatpush.msra.mxu0 0.0
    %173 = vmatpush.msra.mxu0 0.0
    %174 = vmatpush.msra.mxu0 0.0
    %175 = vmatpush.msra.mxu0 0.0
    %176 = vmatpush.msra.mxu0 0.0
    %177 = vmatpush.msra.mxu0 %v23
    %178 = vmatpush.msra.mxu0 %v21
    %179 = vmatmul.f32.gmra.mxu0 %v65
    %v180 = vpop.f32.mrf.mxu0
    %v181 = vadd.f32 %v46, %v180
    %182 = vmatmul.f32.gmra.mxu0 %v68
    %v183 = vpop.f32.mrf.mxu0
    %v184 = vadd.f32 %v51, %v183
    %185 = vmatmul.f32.gmra.mxu0 %v71
    %v186 = vpop.f32.mrf.mxu0
    %v187 = vadd.f32 %v56, %v186
    %188 = vmatmul.f32.gmra.mxu0 %v74
    %v189 = vpop.f32.mrf.mxu0
    %v190 = vadd.f32 %v61, %v189
    %191 = vdwg.mxu0
    %v192 = vadd.f32 %v94, 3.0
    %v193 = vadd.f32 %v123, 3.0
    %v194 = vadd.f32 %v152, 3.0
    %v195 = vadd.f32 %v181, 3.0
    %v196 = vadd.f32 %v97, 3.0
    %v197 = vadd.f32 %v126, 3.0
    %v198 = vadd.f32 %v155, 3.0
    %v199 = vadd.f32 %v184, 3.0
    %v200 = vadd.f32 %v100, 3.0
    %v201 = vadd.f32 %v129, 3.0
    %v202 = vadd.f32 %v158, 3.0
    %v203 = vadd.f32 %v187, 3.0
    %v204 = vadd.f32 %v103, 3.0
    %v205 = vadd.f32 %v132, 3.0
    %v206 = vadd.f32 %v161, 3.0
    %v207 = vadd.f32 %v190, 3.0
    %v208 = vmax.f32 %v192, 0.0
    %v209 = vmax.f32 %v193, 0.0
    %v210 = vmax.f32 %v194, 0.0
    %v211 = vmax.f32 %v195, 0.0
    %v212 = vmax.f32 %v196, 0.0
    %v213 = vmax.f32 %v197, 0.0
    %v214 = vmax.f32 %v198, 0.0
    %v215 = vmax.f32 %v199, 0.0
    %v216 = vmax.f32 %v200, 0.0
    %v217 = vmax.f32 %v201, 0.0
    %v218 = vmax.f32 %v202, 0.0
    %v219 = vmax.f32 %v203, 0.0
    %v220 = vmax.f32 %v204, 0.0
    %v221 = vmax.f32 %v205, 0.0
    %v222 = vmax.f32 %v206, 0.0
    %v223 = vmax.f32 %v207, 0.0
    %v224 = vmin.f32 %v208, 6.0
    %v225 = vmin.f32 %v209, 6.0
    %v226 = vmin.f32 %v210, 6.0
    %v227 = vmin.f32 %v211, 6.0
    %v228 = vmin.f32 %v212, 6.0
    %v229 = vmin.f32 %v213, 6.0
    %v230 = vmin.f32 %v214, 6.0
    %v231 = vmin.f32 %v215, 6.0
    %v232 = vmin.f32 %v216, 6.0
    %v233 = vmin.f32 %v217, 6.0
    %v234 = vmin.f32 %v218, 6.0
    %v235 = vmin.f32 %v219, 6.0
    %v236 = vmin.f32 %v220, 6.0
    %v237 = vmin.f32 %v221, 6.0
    %v238 = vmin.f32 %v222, 6.0
    %v239 = vmin.f32 %v223, 6.0
    %v240 = vmul.f32 %v94, %v224
    %v241 = vmul.f32 %v123, %v225
    %v242 = vmul.f32 %v152, %v226
    %v243 = vmul.f32 %v181, %v227
    %v244 = vmul.f32 %v97, %v228
    %v245 = vmul.f32 %v126, %v229
    %v246 = vmul.f32 %v155, %v230
    %v247 = vmul.f32 %v184, %v231
    %v248 = vmul.f32 %v100, %v232
    %v249 = vmul.f32 %v129, %v233
    %v250 = vmul.f32 %v158, %v234
    %v251 = vmul.f32 %v187, %v235
    %v252 = vmul.f32 %v103, %v236
    %v253 = vmul.f32 %v132, %v237
    %v254 = vmul.f32 %v161, %v238
    %v255 = vmul.f32 %v190, %v239
    %257 = vset.pattern.permute.xlu0 4
    %258 = vperm.xlu0 %257, %v28
    %v259 = vpop.permute.xlu0 %258
    %262 = vset.pattern.permute.xlu0 4
    %263 = vperm.xlu0 %262, %v29
    %v264 = vpop.permute.xlu0 %263
    %267 = vset.pattern.permute.xlu0 4
    %268 = vperm.xlu0 %267, %v30
    %v269 = vpop.permute.xlu0 %268
    %272 = vset.pattern.permute.xlu0 4
    %273 = vperm.xlu0 %272, %v31
    %v274 = vpop.permute.xlu0 %273
    %v276 = vmul.f32 %v240, %v259
    %v277 = vmul.f32 %v241, %v259
    %v278 = vmul.f32 %v242, %v259
    %v279 = vmul.f32 %v243, %v259
    %v280 = vmul.f32 %v244, %v264
    %v281 = vmul.f32 %v245, %v264
    %v282 = vmul.f32 %v246, %v264
    %v283 = vmul.f32 %v247, %v264
    %v284 = vmul.f32 %v248, %v269
    %v285 = vmul.f32 %v249, %v269
    %v286 = vmul.f32 %v250, %v269
    %v287 = vmul.f32 %v251, %v269
    %v288 = vmul.f32 %v252, %v274
    %v289 = vmul.f32 %v253, %v274
    %v290 = vmul.f32 %v254, %v274
    %v291 = vmul.f32 %v255, %v274
    %292 = vrot.lane.b32.xlu0 %v240, 17
    %v293 = vpop.permute.xlu0 %292
    %294 = vrot.lane.b32.xlu0 %v244, 17
    %v295 = vpop.permute.xlu0 %294
    %296 = vrot.lane.b32.xlu0 %v248, 17
    %v297 = vpop.permute.xlu0 %296
    %298 = vrot.lane.b32.xlu0 %v252, 17
    %v299 = vpop.permute.xlu0 %298
    %300 = vrot.lane.b32.xlu0 %v241, 17
    %v301 = vpop.permute.xlu0 %300
    %302 = vrot.lane.b32.xlu0 %v245, 17
    %v303 = vpop.permute.xlu0 %302
    %304 = vrot.lane.b32.xlu0 %v249, 17
    %v305 = vpop.permute.xlu0 %304
    %306 = vrot.lane.b32.xlu0 %v253, 17
    %v307 = vpop.permute.xlu0 %306
    %308 = vrot.lane.b32.xlu0 %v242, 17
    %v309 = vpop.permute.xlu0 %308
    %310 = vrot.lane.b32.xlu0 %v246, 17
    %v311 = vpop.permute.xlu0 %310
    %312 = vrot.lane.b32.xlu0 %v250, 17
    %v313 = vpop.permute.xlu0 %312
    %314 = vrot.lane.b32.xlu0 %v254, 17
    %v315 = vpop.permute.xlu0 %314
    %316 = vrot.lane.b32.xlu0 %v243, 17
    %v317 = vpop.permute.xlu0 %316
    %318 = vrot.lane.b32.xlu0 %v247, 17
    %v319 = vpop.permute.xlu0 %318
    %320 = vrot.lane.b32.xlu0 %v251, 17
    %v321 = vpop.permute.xlu0 %320
    %322 = vrot.lane.b32.xlu0 %v255, 17
    %v323 = vpop.permute.xlu0 %322
    %v324 = vlaneseq
    %v325 = vand.u32 %v324, 127
    %vm326 = vcmp.lt.s32.totalorder %v325, 17
    %v327 = vsel %vm326, %v309, %v317
    %v328 = vsel %vm326, %v311, %v319
    %v329 = vsel %vm326, %v313, %v321
    %v330 = vsel %vm326, %v315, %v323
    %v331 = vsel %vm326, %v301, %v309
    %v332 = vsel %vm326, %v303, %v311
    %v333 = vsel %vm326, %v305, %v313
    %v334 = vsel %vm326, %v307, %v315
    %v335 = vsel %vm326, %v293, %v301
    %v336 = vsel %vm326, %v295, %v303
    %v337 = vsel %vm326, %v297, %v305
    %v338 = vsel %vm326, %v299, %v307
    %v339 = vsel %vm326, %v317, %v293
    %v340 = vsel %vm326, %v319, %v295
    %v341 = vsel %vm326, %v321, %v297
    %v342 = vsel %vm326, %v323, %v299
    %v343 = vld [vmem:[%s1] ss:$8 sm:$0xf]
    %v345 = vperm.slane %v343, 0
    %v346 = vperm.slane %v343, 1
    %v347 = vperm.slane %v343, 2
    %v348 = vperm.slane %v343, 3
    %v353 = vmul.f32 %v339, %v345
    %v354 = vmul.f32 %v335, %v346
    %v355 = vmul.f32 %v331, %v347
    %v356 = vmul.f32 %v327, %v348
    %v357 = vmul.f32 %v340, %v345
    %v358 = vmul.f32 %v336, %v346
    %v359 = vmul.f32 %v332, %v347
    %v360 = vmul.f32 %v328, %v348
    %v361 = vmul.f32 %v341, %v345
    %v362 = vmul.f32 %v337, %v346
    %v363 = vmul.f32 %v333, %v347
    %v364 = vmul.f32 %v329, %v348
    %v365 = vmul.f32 %v342, %v345
    %v366 = vmul.f32 %v338, %v346
    %v367 = vmul.f32 %v334, %v347
    %v368 = vmul.f32 %v330, %v348
    %369 = vset.pattern.permute.xlu0 0
    %370 = vperm.xlu0 %369, %v28
    %v371 = vpop.permute.xlu0 %370
    %373 = vset.pattern.permute.xlu0 0
    %374 = vperm.xlu0 %373, %v29
    %v375 = vpop.permute.xlu0 %374
    %377 = vset.pattern.permute.xlu0 0
    %378 = vperm.xlu0 %377, %v30
    %v379 = vpop.permute.xlu0 %378
    %381 = vset.pattern.permute.xlu0 0
    %382 = vperm.xlu0 %381, %v31
    %v383 = vpop.permute.xlu0 %382
    %v385 = vmul.f32 %v353, %v371
    %v386 = vmul.f32 %v354, %v371
    %v387 = vmul.f32 %v355, %v371
    %v388 = vmul.f32 %v356, %v371
    %v389 = vmul.f32 %v357, %v375
    %v390 = vmul.f32 %v358, %v375
    %v391 = vmul.f32 %v359, %v375
    %v392 = vmul.f32 %v360, %v375
    %v393 = vmul.f32 %v361, %v379
    %v394 = vmul.f32 %v362, %v379
    %v395 = vmul.f32 %v363, %v379
    %v396 = vmul.f32 %v364, %v379
    %v397 = vmul.f32 %v365, %v383
    %v398 = vmul.f32 %v366, %v383
    %v399 = vmul.f32 %v367, %v383
    %v400 = vmul.f32 %v368, %v383
    %v401 = vadd.f32 %v276, %v385
    %v402 = vadd.f32 %v277, %v386
    %v403 = vadd.f32 %v278, %v387
    %v404 = vadd.f32 %v279, %v388
    %v405 = vadd.f32 %v280, %v389
    %v406 = vadd.f32 %v281, %v390
    %v407 = vadd.f32 %v282, %v391
    %v408 = vadd.f32 %v283, %v392
    %v409 = vadd.f32 %v284, %v393
    %v410 = vadd.f32 %v285, %v394
    %v411 = vadd.f32 %v286, %v395
    %v412 = vadd.f32 %v287, %v396
    %v413 = vadd.f32 %v288, %v397
    %v414 = vadd.f32 %v289, %v398
    %v415 = vadd.f32 %v290, %v399
    %v416 = vadd.f32 %v291, %v400
    %417 = vrot.lane.b32.xlu0 %v240, 16
    %v418 = vpop.permute.xlu0 %417
    %419 = vrot.lane.b32.xlu0 %v244, 16
    %v420 = vpop.permute.xlu0 %419
    %421 = vrot.lane.b32.xlu0 %v248, 16
    %v422 = vpop.permute.xlu0 %421
    %423 = vrot.lane.b32.xlu0 %v252, 16
    %v424 = vpop.permute.xlu0 %423
    %425 = vrot.lane.b32.xlu0 %v241, 16
    %v426 = vpop.permute.xlu0 %425
    %427 = vrot.lane.b32.xlu0 %v245, 16
    %v428 = vpop.permute.xlu0 %427
    %429 = vrot.lane.b32.xlu0 %v249, 16
    %v430 = vpop.permute.xlu0 %429
    %431 = vrot.lane.b32.xlu0 %v253, 16
    %v432 = vpop.permute.xlu0 %431
    %433 = vrot.lane.b32.xlu0 %v242, 16
    %v434 = vpop.permute.xlu0 %433
    %435 = vrot.lane.b32.xlu0 %v246, 16
    %v436 = vpop.permute.xlu0 %435
    %437 = vrot.lane.b32.xlu0 %v250, 16
    %v438 = vpop.permute.xlu0 %437
    %439 = vrot.lane.b32.xlu0 %v254, 16
    %v440 = vpop.permute.xlu0 %439
    %441 = vrot.lane.b32.xlu0 %v243, 16
    %v442 = vpop.permute.xlu0 %441
    %443 = vrot.lane.b32.xlu0 %v247, 16
    %v444 = vpop.permute.xlu0 %443
    %445 = vrot.lane.b32.xlu0 %v251, 16
    %v446 = vpop.permute.xlu0 %445
    %447 = vrot.lane.b32.xlu0 %v255, 16
    %v448 = vpop.permute.xlu0 %447
    %vm449 = vcmp.lt.s32.totalorder %v325, 16
    %v450 = vsel %vm449, %v434, %v442
    %v451 = vsel %vm449, %v436, %v444
    %v452 = vsel %vm449, %v438, %v446
    %v453 = vsel %vm449, %v440, %v448
    %v454 = vsel %vm449, %v426, %v434
    %v455 = vsel %vm449, %v428, %v436
    %v456 = vsel %vm449, %v430, %v438
    %v457 = vsel %vm449, %v432, %v440
    %v458 = vsel %vm449, %v418, %v426
    %v459 = vsel %vm449, %v420, %v428
    %v460 = vsel %vm449, %v422, %v430
    %v461 = vsel %vm449, %v424, %v432
    %v462 = vsel %vm449, %v442, %v418
    %v463 = vsel %vm449, %v444, %v420
    %v464 = vsel %vm449, %v446, %v422
    %v465 = vsel %vm449, %v448, %v424
    %s466 = scalar_lea.vmem %s1, 1
    %v467 = vld [vmem:[%s466] ss:$8 sm:$0xf]
    %v469 = vperm.slane %v467, 0
    %v470 = vperm.slane %v467, 1
    %v471 = vperm.slane %v467, 2
    %v472 = vperm.slane %v467, 3
    %v477 = vmul.f32 %v462, %v469
    %v478 = vmul.f32 %v458, %v470
    %v479 = vmul.f32 %v454, %v471
    %v480 = vmul.f32 %v450, %v472
    %v481 = vmul.f32 %v463, %v469
    %v482 = vmul.f32 %v459, %v470
    %v483 = vmul.f32 %v455, %v471
    %v484 = vmul.f32 %v451, %v472
    %v485 = vmul.f32 %v464, %v469
    %v486 = vmul.f32 %v460, %v470
    %v487 = vmul.f32 %v456, %v471
    %v488 = vmul.f32 %v452, %v472
    %v489 = vmul.f32 %v465, %v469
    %v490 = vmul.f32 %v461, %v470
    %v491 = vmul.f32 %v457, %v471
    %v492 = vmul.f32 %v453, %v472
    %493 = vset.pattern.permute.xlu0 1
    %494 = vperm.xlu0 %493, %v28
    %v495 = vpop.permute.xlu0 %494
    %497 = vset.pattern.permute.xlu0 1
    %498 = vperm.xlu0 %497, %v29
    %v499 = vpop.permute.xlu0 %498
    %501 = vset.pattern.permute.xlu0 1
    %502 = vperm.xlu0 %501, %v30
    %v503 = vpop.permute.xlu0 %502
    %505 = vset.pattern.permute.xlu0 1
    %506 = vperm.xlu0 %505, %v31
    %v507 = vpop.permute.xlu0 %506
    %v509 = vmul.f32 %v477, %v495
    %v510 = vmul.f32 %v478, %v495
    %v511 = vmul.f32 %v479, %v495
    %v512 = vmul.f32 %v480, %v495
    %v513 = vmul.f32 %v481, %v499
    %v514 = vmul.f32 %v482, %v499
    %v515 = vmul.f32 %v483, %v499
    %v516 = vmul.f32 %v484, %v499
    %v517 = vmul.f32 %v485, %v503
    %v518 = vmul.f32 %v486, %v503
    %v519 = vmul.f32 %v487, %v503
    %v520 = vmul.f32 %v488, %v503
    %v521 = vmul.f32 %v489, %v507
    %v522 = vmul.f32 %v490, %v507
    %v523 = vmul.f32 %v491, %v507
    %v524 = vmul.f32 %v492, %v507
    %v525 = vadd.f32 %v401, %v509
    %v526 = vadd.f32 %v402, %v510
    %v527 = vadd.f32 %v403, %v511
    %v528 = vadd.f32 %v404, %v512
    %v529 = vadd.f32 %v405, %v513
    %v530 = vadd.f32 %v406, %v514
    %v531 = vadd.f32 %v407, %v515
    %v532 = vadd.f32 %v408, %v516
    %v533 = vadd.f32 %v409, %v517
    %v534 = vadd.f32 %v410, %v518
    %v535 = vadd.f32 %v411, %v519
    %v536 = vadd.f32 %v412, %v520
    %v537 = vadd.f32 %v413, %v521
    %v538 = vadd.f32 %v414, %v522
    %v539 = vadd.f32 %v415, %v523
    %v540 = vadd.f32 %v416, %v524
    %541 = vrot.lane.b32.xlu0 %v240, 15
    %v542 = vpop.permute.xlu0 %541
    %543 = vrot.lane.b32.xlu0 %v244, 15
    %v544 = vpop.permute.xlu0 %543
    %545 = vrot.lane.b32.xlu0 %v248, 15
    %v546 = vpop.permute.xlu0 %545
    %547 = vrot.lane.b32.xlu0 %v252, 15
    %v548 = vpop.permute.xlu0 %547
    %549 = vrot.lane.b32.xlu0 %v241, 15
    %v550 = vpop.permute.xlu0 %549
    %551 = vrot.lane.b32.xlu0 %v245, 15
    %v552 = vpop.permute.xlu0 %551
    %553 = vrot.lane.b32.xlu0 %v249, 15
    %v554 = vpop.permute.xlu0 %553
    %555 = vrot.lane.b32.xlu0 %v253, 15
    %v556 = vpop.permute.xlu0 %555
    %557 = vrot.lane.b32.xlu0 %v242, 15
    %v558 = vpop.permute.xlu0 %557
    %559 = vrot.lane.b32.xlu0 %v246, 15
    %v560 = vpop.permute.xlu0 %559
    %561 = vrot.lane.b32.xlu0 %v250, 15
    %v562 = vpop.permute.xlu0 %561
    %563 = vrot.lane.b32.xlu0 %v254, 15
    %v564 = vpop.permute.xlu0 %563
    %565 = vrot.lane.b32.xlu0 %v243, 15
    %v566 = vpop.permute.xlu0 %565
    %567 = vrot.lane.b32.xlu0 %v247, 15
    %v568 = vpop.permute.xlu0 %567
    %569 = vrot.lane.b32.xlu0 %v251, 15
    %v570 = vpop.permute.xlu0 %569
    %571 = vrot.lane.b32.xlu0 %v255, 15
    %v572 = vpop.permute.xlu0 %571
    %vm573 = vcmp.lt.s32.totalorder %v325, 15
    %v574 = vsel %vm573, %v558, %v566
    %v575 = vsel %vm573, %v560, %v568
    %v576 = vsel %vm573, %v562, %v570
    %v577 = vsel %vm573, %v564, %v572
    %v578 = vsel %vm573, %v550, %v558
    %v579 = vsel %vm573, %v552, %v560
    %v580 = vsel %vm573, %v554, %v562
    %v581 = vsel %vm573, %v556, %v564
    %v582 = vsel %vm573, %v542, %v550
    %v583 = vsel %vm573, %v544, %v552
    %v584 = vsel %vm573, %v546, %v554
    %v585 = vsel %vm573, %v548, %v556
    %v586 = vsel %vm573, %v566, %v542
    %v587 = vsel %vm573, %v568, %v544
    %v588 = vsel %vm573, %v570, %v546
    %v589 = vsel %vm573, %v572, %v548
    %s590 = scalar_lea.vmem %s1, 2
    %v591 = vld [vmem:[%s590] ss:$8 sm:$0xf]
    %v593 = vperm.slane %v591, 0
    %v594 = vperm.slane %v591, 1
    %v595 = vperm.slane %v591, 2
    %v596 = vperm.slane %v591, 3
    %v601 = vmul.f32 %v586, %v593
    %v602 = vmul.f32 %v582, %v594
    %v603 = vmul.f32 %v578, %v595
    %v604 = vmul.f32 %v574, %v596
    %v605 = vmul.f32 %v587, %v593
    %v606 = vmul.f32 %v583, %v594
    %v607 = vmul.f32 %v579, %v595
    %v608 = vmul.f32 %v575, %v596
    %v609 = vmul.f32 %v588, %v593
    %v610 = vmul.f32 %v584, %v594
    %v611 = vmul.f32 %v580, %v595
    %v612 = vmul.f32 %v576, %v596
    %v613 = vmul.f32 %v589, %v593
    %v614 = vmul.f32 %v585, %v594
    %v615 = vmul.f32 %v581, %v595
    %v616 = vmul.f32 %v577, %v596
    %617 = vset.pattern.permute.xlu0 2
    %618 = vperm.xlu0 %617, %v28
    %v619 = vpop.permute.xlu0 %618
    %621 = vset.pattern.permute.xlu0 2
    %622 = vperm.xlu0 %621, %v29
    %v623 = vpop.permute.xlu0 %622
    %625 = vset.pattern.permute.xlu0 2
    %626 = vperm.xlu0 %625, %v30
    %v627 = vpop.permute.xlu0 %626
    %629 = vset.pattern.permute.xlu0 2
    %630 = vperm.xlu0 %629, %v31
    %v631 = vpop.permute.xlu0 %630
    %v633 = vmul.f32 %v601, %v619
    %v634 = vmul.f32 %v602, %v619
    %v635 = vmul.f32 %v603, %v619
    %v636 = vmul.f32 %v604, %v619
    %v637 = vmul.f32 %v605, %v623
    %v638 = vmul.f32 %v606, %v623
    %v639 = vmul.f32 %v607, %v623
    %v640 = vmul.f32 %v608, %v623
    %v641 = vmul.f32 %v609, %v627
    %v642 = vmul.f32 %v610, %v627
    %v643 = vmul.f32 %v611, %v627
    %v644 = vmul.f32 %v612, %v627
    %v645 = vmul.f32 %v613, %v631
    %v646 = vmul.f32 %v614, %v631
    %v647 = vmul.f32 %v615, %v631
    %v648 = vmul.f32 %v616, %v631
    %v649 = vadd.f32 %v525, %v633
    %v650 = vadd.f32 %v526, %v634
    %v651 = vadd.f32 %v527, %v635
    %v652 = vadd.f32 %v528, %v636
    %v653 = vadd.f32 %v529, %v637
    %v654 = vadd.f32 %v530, %v638
    %v655 = vadd.f32 %v531, %v639
    %v656 = vadd.f32 %v532, %v640
    %v657 = vadd.f32 %v533, %v641
    %v658 = vadd.f32 %v534, %v642
    %v659 = vadd.f32 %v535, %v643
    %v660 = vadd.f32 %v536, %v644
    %v661 = vadd.f32 %v537, %v645
    %v662 = vadd.f32 %v538, %v646
    %v663 = vadd.f32 %v539, %v647
    %v664 = vadd.f32 %v540, %v648
    %665 = vrot.lane.b32.xlu0 %v240, 1
    %v666 = vpop.permute.xlu0 %665
    %667 = vrot.lane.b32.xlu0 %v244, 1
    %v668 = vpop.permute.xlu0 %667
    %669 = vrot.lane.b32.xlu0 %v248, 1
    %v670 = vpop.permute.xlu0 %669
    %671 = vrot.lane.b32.xlu0 %v252, 1
    %v672 = vpop.permute.xlu0 %671
    %673 = vrot.lane.b32.xlu0 %v241, 1
    %v674 = vpop.permute.xlu0 %673
    %675 = vrot.lane.b32.xlu0 %v245, 1
    %v676 = vpop.permute.xlu0 %675
    %677 = vrot.lane.b32.xlu0 %v249, 1
    %v678 = vpop.permute.xlu0 %677
    %679 = vrot.lane.b32.xlu0 %v253, 1
    %v680 = vpop.permute.xlu0 %679
    %681 = vrot.lane.b32.xlu0 %v242, 1
    %v682 = vpop.permute.xlu0 %681
    %683 = vrot.lane.b32.xlu0 %v246, 1
    %v684 = vpop.permute.xlu0 %683
    %685 = vrot.lane.b32.xlu0 %v250, 1
    %v686 = vpop.permute.xlu0 %685
    %687 = vrot.lane.b32.xlu0 %v254, 1
    %v688 = vpop.permute.xlu0 %687
    %689 = vrot.lane.b32.xlu0 %v243, 1
    %v690 = vpop.permute.xlu0 %689
    %691 = vrot.lane.b32.xlu0 %v247, 1
    %v692 = vpop.permute.xlu0 %691
    %693 = vrot.lane.b32.xlu0 %v251, 1
    %v694 = vpop.permute.xlu0 %693
    %695 = vrot.lane.b32.xlu0 %v255, 1
    %v696 = vpop.permute.xlu0 %695
    %vm697 = vcmp.lt.s32.totalorder %v325, 1
    %v698 = vsel %vm697, %v682, %v690
    %v699 = vsel %vm697, %v684, %v692
    %v700 = vsel %vm697, %v686, %v694
    %v701 = vsel %vm697, %v688, %v696
    %v702 = vsel %vm697, %v674, %v682
    %v703 = vsel %vm697, %v676, %v684
    %v704 = vsel %vm697, %v678, %v686
    %v705 = vsel %vm697, %v680, %v688
    %v706 = vsel %vm697, %v666, %v674
    %v707 = vsel %vm697, %v668, %v676
    %v708 = vsel %vm697, %v670, %v678
    %v709 = vsel %vm697, %v672, %v680
    %v710 = vsel %vm697, %v690, %v666
    %v711 = vsel %vm697, %v692, %v668
    %v712 = vsel %vm697, %v694, %v670
    %v713 = vsel %vm697, %v696, %v672
    %s714 = scalar_lea.vmem %s1, 3
    %v715 = vld [vmem:[%s714] ss:$8 sm:$0xf]
    %v717 = vperm.slane %v715, 0
    %v718 = vperm.slane %v715, 1
    %v719 = vperm.slane %v715, 2
    %v720 = vperm.slane %v715, 3
    %v725 = vmul.f32 %v710, %v717
    %v726 = vmul.f32 %v706, %v718
    %v727 = vmul.f32 %v702, %v719
    %v728 = vmul.f32 %v698, %v720
    %v729 = vmul.f32 %v711, %v717
    %v730 = vmul.f32 %v707, %v718
    %v731 = vmul.f32 %v703, %v719
    %v732 = vmul.f32 %v699, %v720
    %v733 = vmul.f32 %v712, %v717
    %v734 = vmul.f32 %v708, %v718
    %v735 = vmul.f32 %v704, %v719
    %v736 = vmul.f32 %v700, %v720
    %v737 = vmul.f32 %v713, %v717
    %v738 = vmul.f32 %v709, %v718
    %v739 = vmul.f32 %v705, %v719
    %v740 = vmul.f32 %v701, %v720
    %741 = vset.pattern.permute.xlu0 3
    %742 = vperm.xlu0 %741, %v28
    %v743 = vpop.permute.xlu0 %742
    %745 = vset.pattern.permute.xlu0 3
    %746 = vperm.xlu0 %745, %v29
    %v747 = vpop.permute.xlu0 %746
    %749 = vset.pattern.permute.xlu0 3
    %750 = vperm.xlu0 %749, %v30
    %v751 = vpop.permute.xlu0 %750
    %753 = vset.pattern.permute.xlu0 3
    %754 = vperm.xlu0 %753, %v31
    %v755 = vpop.permute.xlu0 %754
    %v757 = vmul.f32 %v725, %v743
    %v758 = vmul.f32 %v726, %v743
    %v759 = vmul.f32 %v727, %v743
    %v760 = vmul.f32 %v728, %v743
    %v761 = vmul.f32 %v729, %v747
    %v762 = vmul.f32 %v730, %v747
    %v763 = vmul.f32 %v731, %v747
    %v764 = vmul.f32 %v732, %v747
    %v765 = vmul.f32 %v733, %v751
    %v766 = vmul.f32 %v734, %v751
    %v767 = vmul.f32 %v735, %v751
    %v768 = vmul.f32 %v736, %v751
    %v769 = vmul.f32 %v737, %v755
    %v770 = vmul.f32 %v738, %v755
    %v771 = vmul.f32 %v739, %v755
    %v772 = vmul.f32 %v740, %v755
    %v773 = vadd.f32 %v649, %v757
    %v774 = vadd.f32 %v650, %v758
    %v775 = vadd.f32 %v651, %v759
    %v776 = vadd.f32 %v652, %v760
    %v777 = vadd.f32 %v653, %v761
    %v778 = vadd.f32 %v654, %v762
    %v779 = vadd.f32 %v655, %v763
    %v780 = vadd.f32 %v656, %v764
    %v781 = vadd.f32 %v657, %v765
    %v782 = vadd.f32 %v658, %v766
    %v783 = vadd.f32 %v659, %v767
    %v784 = vadd.f32 %v660, %v768
    %v785 = vadd.f32 %v661, %v769
    %v786 = vadd.f32 %v662, %v770
    %v787 = vadd.f32 %v663, %v771
    %v788 = vadd.f32 %v664, %v772
    %789 = vrot.lane.b32.xlu0 %v240, 127
    %v790 = vpop.permute.xlu0 %789
    %791 = vrot.lane.b32.xlu0 %v244, 127
    %v792 = vpop.permute.xlu0 %791
    %793 = vrot.lane.b32.xlu0 %v248, 127
    %v794 = vpop.permute.xlu0 %793
    %795 = vrot.lane.b32.xlu0 %v252, 127
    %v796 = vpop.permute.xlu0 %795
    %797 = vrot.lane.b32.xlu0 %v241, 127
    %v798 = vpop.permute.xlu0 %797
    %799 = vrot.lane.b32.xlu0 %v245, 127
    %v800 = vpop.permute.xlu0 %799
    %801 = vrot.lane.b32.xlu0 %v249, 127
    %v802 = vpop.permute.xlu0 %801
    %803 = vrot.lane.b32.xlu0 %v253, 127
    %v804 = vpop.permute.xlu0 %803
    %805 = vrot.lane.b32.xlu0 %v242, 127
    %v806 = vpop.permute.xlu0 %805
    %807 = vrot.lane.b32.xlu0 %v246, 127
    %v808 = vpop.permute.xlu0 %807
    %809 = vrot.lane.b32.xlu0 %v250, 127
    %v810 = vpop.permute.xlu0 %809
    %811 = vrot.lane.b32.xlu0 %v254, 127
    %v812 = vpop.permute.xlu0 %811
    %813 = vrot.lane.b32.xlu0 %v243, 127
    %v814 = vpop.permute.xlu0 %813
    %815 = vrot.lane.b32.xlu0 %v247, 127
    %v816 = vpop.permute.xlu0 %815
    %817 = vrot.lane.b32.xlu0 %v251, 127
    %v818 = vpop.permute.xlu0 %817
    %819 = vrot.lane.b32.xlu0 %v255, 127
    %v820 = vpop.permute.xlu0 %819
    %vm821 = vcmp.lt.s32.totalorder %v325, 127
    %v822 = vsel %vm821, %v806, %v814
    %v823 = vsel %vm821, %v808, %v816
    %v824 = vsel %vm821, %v810, %v818
    %v825 = vsel %vm821, %v812, %v820
    %v826 = vsel %vm821, %v798, %v806
    %v827 = vsel %vm821, %v800, %v808
    %v828 = vsel %vm821, %v802, %v810
    %v829 = vsel %vm821, %v804, %v812
    %v830 = vsel %vm821, %v790, %v798
    %v831 = vsel %vm821, %v792, %v800
    %v832 = vsel %vm821, %v794, %v802
    %v833 = vsel %vm821, %v796, %v804
    %v834 = vsel %vm821, %v814, %v790
    %v835 = vsel %vm821, %v816, %v792
    %v836 = vsel %vm821, %v818, %v794
    %v837 = vsel %vm821, %v820, %v796
    %s838 = scalar_lea.vmem %s1, 5
    %v839 = vld [vmem:[%s838] ss:$8 sm:$0xf]
    %v841 = vperm.slane %v839, 0
    %v842 = vperm.slane %v839, 1
    %v843 = vperm.slane %v839, 2
    %v844 = vperm.slane %v839, 3
    %v849 = vmul.f32 %v830, %v841
    %v850 = vmul.f32 %v826, %v842
    %v851 = vmul.f32 %v822, %v843
    %v852 = vmul.f32 %v834, %v844
    %v853 = vmul.f32 %v831, %v841
    %v854 = vmul.f32 %v827, %v842
    %v855 = vmul.f32 %v823, %v843
    %v856 = vmul.f32 %v835, %v844
    %v857 = vmul.f32 %v832, %v841
    %v858 = vmul.f32 %v828, %v842
    %v859 = vmul.f32 %v824, %v843
    %v860 = vmul.f32 %v836, %v844
    %v861 = vmul.f32 %v833, %v841
    %v862 = vmul.f32 %v829, %v842
    %v863 = vmul.f32 %v825, %v843
    %v864 = vmul.f32 %v837, %v844
    %865 = vset.pattern.permute.xlu0 5
    %866 = vperm.xlu0 %865, %v28
    %v867 = vpop.permute.xlu0 %866
    %869 = vset.pattern.permute.xlu0 5
    %870 = vperm.xlu0 %869, %v29
    %v871 = vpop.permute.xlu0 %870
    %873 = vset.pattern.permute.xlu0 5
    %874 = vperm.xlu0 %873, %v30
    %v875 = vpop.permute.xlu0 %874
    %877 = vset.pattern.permute.xlu0 5
    %878 = vperm.xlu0 %877, %v31
    %v879 = vpop.permute.xlu0 %878
    %v881 = vmul.f32 %v849, %v867
    %v882 = vmul.f32 %v850, %v867
    %v883 = vmul.f32 %v851, %v867
    %v884 = vmul.f32 %v852, %v867
    %v885 = vmul.f32 %v853, %v871
    %v886 = vmul.f32 %v854, %v871
    %v887 = vmul.f32 %v855, %v871
    %v888 = vmul.f32 %v856, %v871
    %v889 = vmul.f32 %v857, %v875
    %v890 = vmul.f32 %v858, %v875
    %v891 = vmul.f32 %v859, %v875
    %v892 = vmul.f32 %v860, %v875
    %v893 = vmul.f32 %v861, %v879
    %v894 = vmul.f32 %v862, %v879
    %v895 = vmul.f32 %v863, %v879
    %v896 = vmul.f32 %v864, %v879
    %v897 = vadd.f32 %v773, %v881
    %v898 = vadd.f32 %v774, %v882
    %v899 = vadd.f32 %v775, %v883
    %v900 = vadd.f32 %v776, %v884
    %v901 = vadd.f32 %v777, %v885
    %v902 = vadd.f32 %v778, %v886
    %v903 = vadd.f32 %v779, %v887
    %v904 = vadd.f32 %v780, %v888
    %v905 = vadd.f32 %v781, %v889
    %v906 = vadd.f32 %v782, %v890
    %v907 = vadd.f32 %v783, %v891
    %v908 = vadd.f32 %v784, %v892
    %v909 = vadd.f32 %v785, %v893
    %v910 = vadd.f32 %v786, %v894
    %v911 = vadd.f32 %v787, %v895
    %v912 = vadd.f32 %v788, %v896
    %913 = vrot.lane.b32.xlu0 %v240, 113
    %v914 = vpop.permute.xlu0 %913
    %915 = vrot.lane.b32.xlu0 %v244, 113
    %v916 = vpop.permute.xlu0 %915
    %917 = vrot.lane.b32.xlu0 %v248, 113
    %v918 = vpop.permute.xlu0 %917
    %919 = vrot.lane.b32.xlu0 %v252, 113
    %v920 = vpop.permute.xlu0 %919
    %921 = vrot.lane.b32.xlu0 %v241, 113
    %v922 = vpop.permute.xlu0 %921
    %923 = vrot.lane.b32.xlu0 %v245, 113
    %v924 = vpop.permute.xlu0 %923
    %925 = vrot.lane.b32.xlu0 %v249, 113
    %v926 = vpop.permute.xlu0 %925
    %927 = vrot.lane.b32.xlu0 %v253, 113
    %v928 = vpop.permute.xlu0 %927
    %929 = vrot.lane.b32.xlu0 %v242, 113
    %v930 = vpop.permute.xlu0 %929
    %931 = vrot.lane.b32.xlu0 %v246, 113
    %v932 = vpop.permute.xlu0 %931
    %933 = vrot.lane.b32.xlu0 %v250, 113
    %v934 = vpop.permute.xlu0 %933
    %935 = vrot.lane.b32.xlu0 %v254, 113
    %v936 = vpop.permute.xlu0 %935
    %937 = vrot.lane.b32.xlu0 %v243, 113
    %v938 = vpop.permute.xlu0 %937
    %939 = vrot.lane.b32.xlu0 %v247, 113
    %v940 = vpop.permute.xlu0 %939
    %941 = vrot.lane.b32.xlu0 %v251, 113
    %v942 = vpop.permute.xlu0 %941
    %943 = vrot.lane.b32.xlu0 %v255, 113
    %v944 = vpop.permute.xlu0 %943
    %vm945 = vcmp.lt.s32.totalorder %v325, 113
    %v946 = vsel %vm945, %v930, %v938
    %v947 = vsel %vm945, %v932, %v940
    %v948 = vsel %vm945, %v934, %v942
    %v949 = vsel %vm945, %v936, %v944
    %v950 = vsel %vm945, %v922, %v930
    %v951 = vsel %vm945, %v924, %v932
    %v952 = vsel %vm945, %v926, %v934
    %v953 = vsel %vm945, %v928, %v936
    %v954 = vsel %vm945, %v914, %v922
    %v955 = vsel %vm945, %v916, %v924
    %v956 = vsel %vm945, %v918, %v926
    %v957 = vsel %vm945, %v920, %v928
    %v958 = vsel %vm945, %v938, %v914
    %v959 = vsel %vm945, %v940, %v916
    %v960 = vsel %vm945, %v942, %v918
    %v961 = vsel %vm945, %v944, %v920
    %s962 = scalar_lea.vmem %s1, 6
    %v963 = vld [vmem:[%s962] ss:$8 sm:$0xf]
    %v965 = vperm.slane %v963, 0
    %v966 = vperm.slane %v963, 1
    %v967 = vperm.slane %v963, 2
    %v968 = vperm.slane %v963, 3
    %v973 = vmul.f32 %v954, %v965
    %v974 = vmul.f32 %v950, %v966
    %v975 = vmul.f32 %v946, %v967
    %v976 = vmul.f32 %v958, %v968
    %v977 = vmul.f32 %v955, %v965
    %v978 = vmul.f32 %v951, %v966
    %v979 = vmul.f32 %v947, %v967
    %v980 = vmul.f32 %v959, %v968
    %v981 = vmul.f32 %v956, %v965
    %v982 = vmul.f32 %v952, %v966
    %v983 = vmul.f32 %v948, %v967
    %v984 = vmul.f32 %v960, %v968
    %v985 = vmul.f32 %v957, %v965
    %v986 = vmul.f32 %v953, %v966
    %v987 = vmul.f32 %v949, %v967
    %v988 = vmul.f32 %v961, %v968
    %989 = vset.pattern.permute.xlu0 6
    %990 = vperm.xlu0 %989, %v28
    %v991 = vpop.permute.xlu0 %990
    %993 = vset.pattern.permute.xlu0 6
    %994 = vperm.xlu0 %993, %v29
    %v995 = vpop.permute.xlu0 %994
    %997 = vset.pattern.permute.xlu0 6
    %998 = vperm.xlu0 %997, %v30
    %v999 = vpop.permute.xlu0 %998
    %1001 = vset.pattern.permute.xlu0 6
    %1002 = vperm.xlu0 %1001, %v31
    %v1003 = vpop.permute.xlu0 %1002
    %v1005 = vmul.f32 %v973, %v991
    %v1006 = vmul.f32 %v974, %v991
    %v1007 = vmul.f32 %v975, %v991
    %v1008 = vmul.f32 %v976, %v991
    %v1009 = vmul.f32 %v977, %v995
    %v1010 = vmul.f32 %v978, %v995
    %v1011 = vmul.f32 %v979, %v995
    %v1012 = vmul.f32 %v980, %v995
    %v1013 = vmul.f32 %v981, %v999
    %v1014 = vmul.f32 %v982, %v999
    %v1015 = vmul.f32 %v983, %v999
    %v1016 = vmul.f32 %v984, %v999
    %v1017 = vmul.f32 %v985, %v1003
    %v1018 = vmul.f32 %v986, %v1003
    %v1019 = vmul.f32 %v987, %v1003
    %v1020 = vmul.f32 %v988, %v1003
    %v1021 = vadd.f32 %v897, %v1005
    %v1022 = vadd.f32 %v898, %v1006
    %v1023 = vadd.f32 %v899, %v1007
    %v1024 = vadd.f32 %v900, %v1008
    %v1025 = vadd.f32 %v901, %v1009
    %v1026 = vadd.f32 %v902, %v1010
    %v1027 = vadd.f32 %v903, %v1011
    %v1028 = vadd.f32 %v904, %v1012
    %v1029 = vadd.f32 %v905, %v1013
    %v1030 = vadd.f32 %v906, %v1014
    %v1031 = vadd.f32 %v907, %v1015
    %v1032 = vadd.f32 %v908, %v1016
    %v1033 = vadd.f32 %v909, %v1017
    %v1034 = vadd.f32 %v910, %v1018
    %v1035 = vadd.f32 %v911, %v1019
    %v1036 = vadd.f32 %v912, %v1020
    %1037 = vrot.lane.b32.xlu0 %v240, 112
    %v1038 = vpop.permute.xlu0 %1037
    %1039 = vrot.lane.b32.xlu0 %v244, 112
    %v1040 = vpop.permute.xlu0 %1039
    %1041 = vrot.lane.b32.xlu0 %v248, 112
    %v1042 = vpop.permute.xlu0 %1041
    %1043 = vrot.lane.b32.xlu0 %v252, 112
    %v1044 = vpop.permute.xlu0 %1043
    %1045 = vrot.lane.b32.xlu0 %v241, 112
    %v1046 = vpop.permute.xlu0 %1045
    %1047 = vrot.lane.b32.xlu0 %v245, 112
    %v1048 = vpop.permute.xlu0 %1047
    %1049 = vrot.lane.b32.xlu0 %v249, 112
    %v1050 = vpop.permute.xlu0 %1049
    %1051 = vrot.lane.b32.xlu0 %v253, 112
    %v1052 = vpop.permute.xlu0 %1051
    %1053 = vrot.lane.b32.xlu0 %v242, 112
    %v1054 = vpop.permute.xlu0 %1053
    %1055 = vrot.lane.b32.xlu0 %v246, 112
    %v1056 = vpop.permute.xlu0 %1055
    %1057 = vrot.lane.b32.xlu0 %v250, 112
    %v1058 = vpop.permute.xlu0 %1057
    %1059 = vrot.lane.b32.xlu0 %v254, 112
    %v1060 = vpop.permute.xlu0 %1059
    %1061 = vrot.lane.b32.xlu0 %v243, 112
    %v1062 = vpop.permute.xlu0 %1061
    %1063 = vrot.lane.b32.xlu0 %v247, 112
    %v1064 = vpop.permute.xlu0 %1063
    %1065 = vrot.lane.b32.xlu0 %v251, 112
    %v1066 = vpop.permute.xlu0 %1065
    %1067 = vrot.lane.b32.xlu0 %v255, 112
    %v1068 = vpop.permute.xlu0 %1067
    %vm1069 = vcmp.lt.s32.totalorder %v325, 112
    %v1070 = vsel %vm1069, %v1054, %v1062
    %v1071 = vsel %vm1069, %v1056, %v1064
    %v1072 = vsel %vm1069, %v1058, %v1066
    %v1073 = vsel %vm1069, %v1060, %v1068
    %v1074 = vsel %vm1069, %v1046, %v1054
    %v1075 = vsel %vm1069, %v1048, %v1056
    %v1076 = vsel %vm1069, %v1050, %v1058
    %v1077 = vsel %vm1069, %v1052, %v1060
    %v1078 = vsel %vm1069, %v1038, %v1046
    %v1079 = vsel %vm1069, %v1040, %v1048
    %v1080 = vsel %vm1069, %v1042, %v1050
    %v1081 = vsel %vm1069, %v1044, %v1052
    %v1082 = vsel %vm1069, %v1062, %v1038
    %v1083 = vsel %vm1069, %v1064, %v1040
    %v1084 = vsel %vm1069, %v1066, %v1042
    %v1085 = vsel %vm1069, %v1068, %v1044
    %s1086 = scalar_lea.vmem %s1, 7
    %v1087 = vld [vmem:[%s1086] ss:$8 sm:$0xf]
    %v1089 = vperm.slane %v1087, 0
    %v1090 = vperm.slane %v1087, 1
    %v1091 = vperm.slane %v1087, 2
    %v1092 = vperm.slane %v1087, 3
    %v1097 = vmul.f32 %v1078, %v1089
    %v1098 = vmul.f32 %v1074, %v1090
    %v1099 = vmul.f32 %v1070, %v1091
    %v1100 = vmul.f32 %v1082, %v1092
    %v1101 = vmul.f32 %v1079, %v1089
    %v1102 = vmul.f32 %v1075, %v1090
    %v1103 = vmul.f32 %v1071, %v1091
    %v1104 = vmul.f32 %v1083, %v1092
    %v1105 = vmul.f32 %v1080, %v1089
    %v1106 = vmul.f32 %v1076, %v1090
    %v1107 = vmul.f32 %v1072, %v1091
    %v1108 = vmul.f32 %v1084, %v1092
    %v1109 = vmul.f32 %v1081, %v1089
    %v1110 = vmul.f32 %v1077, %v1090
    %v1111 = vmul.f32 %v1073, %v1091
    %v1112 = vmul.f32 %v1085, %v1092
    %1113 = vset.pattern.permute.xlu0 7
    %1114 = vperm.xlu0 %1113, %v28
    %v1115 = vpop.permute.xlu0 %1114
    %1117 = vset.pattern.permute.xlu0 7
    %1118 = vperm.xlu0 %1117, %v29
    %v1119 = vpop.permute.xlu0 %1118
    %1121 = vset.pattern.permute.xlu0 7
    %1122 = vperm.xlu0 %1121, %v30
    %v1123 = vpop.permute.xlu0 %1122
    %1125 = vset.pattern.permute.xlu0 7
    %1126 = vperm.xlu0 %1125, %v31
    %v1127 = vpop.permute.xlu0 %1126
    %v1129 = vmul.f32 %v1097, %v1115
    %v1130 = vmul.f32 %v1098, %v1115
    %v1131 = vmul.f32 %v1099, %v1115
    %v1132 = vmul.f32 %v1100, %v1115
    %v1133 = vmul.f32 %v1101, %v1119
    %v1134 = vmul.f32 %v1102, %v1119
    %v1135 = vmul.f32 %v1103, %v1119
    %v1136 = vmul.f32 %v1104, %v1119
    %v1137 = vmul.f32 %v1105, %v1123
    %v1138 = vmul.f32 %v1106, %v1123
    %v1139 = vmul.f32 %v1107, %v1123
    %v1140 = vmul.f32 %v1108, %v1123
    %v1141 = vmul.f32 %v1109, %v1127
    %v1142 = vmul.f32 %v1110, %v1127
    %v1143 = vmul.f32 %v1111, %v1127
    %v1144 = vmul.f32 %v1112, %v1127
    %v1145 = vadd.f32 %v1021, %v1129
    %v1146 = vadd.f32 %v1022, %v1130
    %v1147 = vadd.f32 %v1023, %v1131
    %v1148 = vadd.f32 %v1024, %v1132
    %v1149 = vadd.f32 %v1025, %v1133
    %v1150 = vadd.f32 %v1026, %v1134
    %v1151 = vadd.f32 %v1027, %v1135
    %v1152 = vadd.f32 %v1028, %v1136
    %v1153 = vadd.f32 %v1029, %v1137
    %v1154 = vadd.f32 %v1030, %v1138
    %v1155 = vadd.f32 %v1031, %v1139
    %v1156 = vadd.f32 %v1032, %v1140
    %v1157 = vadd.f32 %v1033, %v1141
    %v1158 = vadd.f32 %v1034, %v1142
    %v1159 = vadd.f32 %v1035, %v1143
    %v1160 = vadd.f32 %v1036, %v1144
    %1161 = vrot.lane.b32.xlu0 %v240, 111
    %v1162 = vpop.permute.xlu0 %1161
    %1163 = vrot.lane.b32.xlu0 %v244, 111
    %v1164 = vpop.permute.xlu0 %1163
    %1165 = vrot.lane.b32.xlu0 %v248, 111
    %v1166 = vpop.permute.xlu0 %1165
    %1167 = vrot.lane.b32.xlu0 %v252, 111
    %v1168 = vpop.permute.xlu0 %1167
    %1169 = vrot.lane.b32.xlu0 %v241, 111
    %v1170 = vpop.permute.xlu0 %1169
    %1171 = vrot.lane.b32.xlu0 %v245, 111
    %v1172 = vpop.permute.xlu0 %1171
    %1173 = vrot.lane.b32.xlu0 %v249, 111
    %v1174 = vpop.permute.xlu0 %1173
    %1175 = vrot.lane.b32.xlu0 %v253, 111
    %v1176 = vpop.permute.xlu0 %1175
    %1177 = vrot.lane.b32.xlu0 %v242, 111
    %v1178 = vpop.permute.xlu0 %1177
    %1179 = vrot.lane.b32.xlu0 %v246, 111
    %v1180 = vpop.permute.xlu0 %1179
    %1181 = vrot.lane.b32.xlu0 %v250, 111
    %v1182 = vpop.permute.xlu0 %1181
    %1183 = vrot.lane.b32.xlu0 %v254, 111
    %v1184 = vpop.permute.xlu0 %1183
    %1185 = vrot.lane.b32.xlu0 %v243, 111
    %v1186 = vpop.permute.xlu0 %1185
    %1187 = vrot.lane.b32.xlu0 %v247, 111
    %v1188 = vpop.permute.xlu0 %1187
    %1189 = vrot.lane.b32.xlu0 %v251, 111
    %v1190 = vpop.permute.xlu0 %1189
    %1191 = vrot.lane.b32.xlu0 %v255, 111
    %v1192 = vpop.permute.xlu0 %1191
    %vm1193 = vcmp.lt.s32.totalorder %v325, 111
    %v1194 = vsel %vm1193, %v1178, %v1186
    %v1195 = vsel %vm1193, %v1180, %v1188
    %v1196 = vsel %vm1193, %v1182, %v1190
    %v1197 = vsel %vm1193, %v1184, %v1192
    %v1198 = vsel %vm1193, %v1170, %v1178
    %v1199 = vsel %vm1193, %v1172, %v1180
    %v1200 = vsel %vm1193, %v1174, %v1182
    %v1201 = vsel %vm1193, %v1176, %v1184
    %v1202 = vsel %vm1193, %v1162, %v1170
    %v1203 = vsel %vm1193, %v1164, %v1172
    %v1204 = vsel %vm1193, %v1166, %v1174
    %v1205 = vsel %vm1193, %v1168, %v1176
    %v1206 = vsel %vm1193, %v1186, %v1162
    %v1207 = vsel %vm1193, %v1188, %v1164
    %v1208 = vsel %vm1193, %v1190, %v1166
    %v1209 = vsel %vm1193, %v1192, %v1168
    %s1210 = scalar_lea.vmem %s1, 32
    %v1211 = vld [vmem:[%s1210] ss:$8 sm:$0xf]
    %v1213 = vperm.slane %v1211, 0
    %v1214 = vperm.slane %v1211, 1
    %v1215 = vperm.slane %v1211, 2
    %v1216 = vperm.slane %v1211, 3
    %v1221 = vmul.f32 %v1202, %v1213
    %v1222 = vmul.f32 %v1198, %v1214
    %v1223 = vmul.f32 %v1194, %v1215
    %v1224 = vmul.f32 %v1206, %v1216
    %v1225 = vmul.f32 %v1203, %v1213
    %v1226 = vmul.f32 %v1199, %v1214
    %v1227 = vmul.f32 %v1195, %v1215
    %v1228 = vmul.f32 %v1207, %v1216
    %v1229 = vmul.f32 %v1204, %v1213
    %v1230 = vmul.f32 %v1200, %v1214
    %v1231 = vmul.f32 %v1196, %v1215
    %v1232 = vmul.f32 %v1208, %v1216
    %v1233 = vmul.f32 %v1205, %v1213
    %v1234 = vmul.f32 %v1201, %v1214
    %v1235 = vmul.f32 %v1197, %v1215
    %v1236 = vmul.f32 %v1209, %v1216
    %1237 = vset.pattern.permute.xlu0 8
    %1238 = vperm.xlu0 %1237, %v28
    %v1239 = vpop.permute.xlu0 %1238
    %1241 = vset.pattern.permute.xlu0 8
    %1242 = vperm.xlu0 %1241, %v29
    %v1243 = vpop.permute.xlu0 %1242
    %1245 = vset.pattern.permute.xlu0 8
    %1246 = vperm.xlu0 %1245, %v30
    %v1247 = vpop.permute.xlu0 %1246
    %1249 = vset.pattern.permute.xlu0 8
    %1250 = vperm.xlu0 %1249, %v31
    %v1251 = vpop.permute.xlu0 %1250
    %v1253 = vmul.f32 %v1221, %v1239
    %v1254 = vmul.f32 %v1222, %v1239
    %v1255 = vmul.f32 %v1223, %v1239
    %v1256 = vmul.f32 %v1224, %v1239
    %v1257 = vmul.f32 %v1225, %v1243
    %v1258 = vmul.f32 %v1226, %v1243
    %v1259 = vmul.f32 %v1227, %v1243
    %v1260 = vmul.f32 %v1228, %v1243
    %v1261 = vmul.f32 %v1229, %v1247
    %v1262 = vmul.f32 %v1230, %v1247
    %v1263 = vmul.f32 %v1231, %v1247
    %v1264 = vmul.f32 %v1232, %v1247
    %v1265 = vmul.f32 %v1233, %v1251
    %v1266 = vmul.f32 %v1234, %v1251
    %v1267 = vmul.f32 %v1235, %v1251
    %v1268 = vmul.f32 %v1236, %v1251
    %v1269 = vadd.f32 %v1145, %v1253
    %v1270 = vadd.f32 %v1146, %v1254
    %v1271 = vadd.f32 %v1147, %v1255
    %v1272 = vadd.f32 %v1148, %v1256
    %v1273 = vadd.f32 %v1149, %v1257
    %v1274 = vadd.f32 %v1150, %v1258
    %v1275 = vadd.f32 %v1151, %v1259
    %v1276 = vadd.f32 %v1152, %v1260
    %v1277 = vadd.f32 %v1153, %v1261
    %v1278 = vadd.f32 %v1154, %v1262
    %v1279 = vadd.f32 %v1155, %v1263
    %v1280 = vadd.f32 %v1156, %v1264
    %v1281 = vadd.f32 %v1157, %v1265
    %v1282 = vadd.f32 %v1158, %v1266
    %v1283 = vadd.f32 %v1159, %v1267
    %v1284 = vadd.f32 %v1160, %v1268
    %1285 = vset.pattern.permute.xlu0 1
    %1286 = vperm.xlu0 %1285, %v39
    %v1287 = vpop.permute.xlu0 %1286
    %1289 = vset.pattern.permute.xlu0 1
    %1290 = vperm.xlu0 %1289, %v40
    %v1291 = vpop.permute.xlu0 %1290
    %1293 = vset.pattern.permute.xlu0 1
    %1294 = vperm.xlu0 %1293, %v41
    %v1295 = vpop.permute.xlu0 %1294
    %1297 = vset.pattern.permute.xlu0 1
    %1298 = vperm.xlu0 %1297, %v42
    %v1299 = vpop.permute.xlu0 %1298
    %v1301 = vadd.f32 %v1269, %v1287
    %v1302 = vadd.f32 %v1270, %v1287
    %v1303 = vadd.f32 %v1271, %v1287
    %v1304 = vadd.f32 %v1272, %v1287
    %v1305 = vadd.f32 %v1273, %v1291
    %v1306 = vadd.f32 %v1274, %v1291
    %v1307 = vadd.f32 %v1275, %v1291
    %v1308 = vadd.f32 %v1276, %v1291
    %v1309 = vadd.f32 %v1277, %v1295
    %v1310 = vadd.f32 %v1278, %v1295
    %v1311 = vadd.f32 %v1279, %v1295
    %v1312 = vadd.f32 %v1280, %v1295
    %v1313 = vadd.f32 %v1281, %v1299
    %v1314 = vadd.f32 %v1282, %v1299
    %v1315 = vadd.f32 %v1283, %v1299
    %v1316 = vadd.f32 %v1284, %v1299
    %v1317 = vadd.f32 %v1301, %v1302
    %1318 = vadd.xlane.f32.xlu0 %v1317
    %v1319 = vpop.xlane.xlu0 %1318
    %v1320 = vadd.f32 %v1305, %v1306
    %1321 = vadd.xlane.f32.xlu0 %v1320
    %v1322 = vpop.xlane.xlu0 %1321
    %v1323 = vadd.f32 %v1309, %v1310
    %1324 = vadd.xlane.f32.xlu0 %v1323
    %v1325 = vpop.xlane.xlu0 %1324
    %v1326 = vadd.f32 %v1313, %v1314
    %1327 = vadd.xlane.f32.xlu0 %v1326
    %v1328 = vpop.xlane.xlu0 %1327
    %v1329 = vrcp.pop 256.0
    %v1330 = vmul.f32 256.0, %v1329
    %v1331 = vsub.f32 1.0, %v1330
    %v1332 = vmul.f32 %v1329, %v1331
    %v1333 = vadd.f32 %v1329, %v1332
    %vm1334 = vweird.f32 %v1329
    %v1335 = vsel %vm1334, %v1329, %v1333
    %v1336 = vmul.f32 %v1319, %v1335
    %v1337 = vmul.f32 %v1322, %v1335
    %v1338 = vmul.f32 %v1325, %v1335
    %v1339 = vmul.f32 %v1328, %v1335
    %v1340 = vadd.f32 %v1303, %v1304
    %1341 = vadd.xlane.f32.xlu0 %v1340
    %v1342 = vpop.xlane.xlu0 %1341
    %v1343 = vadd.f32 %v1307, %v1308
    %1344 = vadd.xlane.f32.xlu0 %v1343
    %v1345 = vpop.xlane.xlu0 %1344
    %v1346 = vadd.f32 %v1311, %v1312
    %1347 = vadd.xlane.f32.xlu0 %v1346
    %v1348 = vpop.xlane.xlu0 %1347
    %v1349 = vadd.f32 %v1315, %v1316
    %1350 = vadd.xlane.f32.xlu0 %v1349
    %v1351 = vpop.xlane.xlu0 %1350
    %v1352 = vmul.f32 %v1342, %v1335
    %v1353 = vmul.f32 %v1345, %v1335
    %v1354 = vmul.f32 %v1348, %v1335
    %v1355 = vmul.f32 %v1351, %v1335
    %vm1356 = vcmask 7168
    %v1357 = vsel %vm1356, %v1336, %v1352
    %v1358 = vsel %vm1356, %v1337, %v1353
    %v1359 = vsel %vm1356, %v1338, %v1354
    %v1360 = vsel %vm1356, %v1339, %v1355
    %vm1361 = vcmask 261120
    %v1363 = vsel %vm1361, %v36, 0
    %1365 = vmatpush.msra.mxu0 0.0
    %1366 = vmatpush.msra.mxu0 0.0
    %1367 = vmatpush.msra.mxu0 0.0
    %1368 = vmatpush.msra.mxu0 0.0
    %1369 = vmatpush.msra.mxu0 0.0
    %1370 = vmatpush.msra.mxu0 0.0
    %1371 = vmatpush.msra.mxu0 0.0
    %1372 = vmatpush.msra.mxu0 0.0
    %1373 = vmatpush.msra.mxu0 0.0
    %1374 = vmatpush.msra.mxu0 0.0
    %1375 = vmatpush.msra.mxu0 0.0
    %1376 = vmatpush.msra.mxu0 0.0
    %1377 = vmatpush.msra.mxu0 %v1360
    %1378 = vmatpush.msra.mxu0 %v1359
    %1379 = vmatpush.msra.mxu0 %v1358
    %1380 = vmatpush.msra.mxu0 %v1357
    %1381 = vmatmul.f32.gmra.mxu0 %v1363
    %v1382 = vpop.f32.mrf.mxu0
    %v1383 = vadd.f32 0.0, %v1382
    %1384 = vdwg.mxu0
    %v1385 = vmax.f32 %v1383, 0.0
    %vm1386 = vcmask 64512
    %v1388 = vsel %vm1386, %v32, 0
    %v1391 = vsel %vm1386, %v33, 0
    %v1394 = vsel %vm1386, %v34, 0
    %v1397 = vsel %vm1386, %v35, 0
    %1399 = vmatpush.msra.mxu0 0.0
    %1400 = vmatpush.msra.mxu0 0.0
    %1401 = vmatpush.msra.mxu0 0.0
    %1402 = vmatpush.msra.mxu0 0.0
    %1403 = vmatpush.msra.mxu0 0.0
    %1404 = vmatpush.msra.mxu0 0.0
    %1405 = vmatpush.msra.mxu0 0.0
    %1406 = vmatpush.msra.mxu0 0.0
    %1407 = vmatpush.msra.mxu0 0.0
    %1408 = vmatpush.msra.mxu0 0.0
    %1409 = vmatpush.msra.mxu0 0.0
    %1410 = vmatpush.msra.mxu0 0.0
    %1411 = vmatpush.msra.mxu0 0.0
    %1412 = vmatpush.msra.mxu0 0.0
    %1413 = vmatpush.msra.mxu0 0.0
    %1414 = vmatpush.msra.mxu0 %v1385
    %1415 = vmatmul.f32.gmra.mxu0 %v1388
    %v1416 = vpop.f32.mrf.mxu0
    %v1417 = vadd.f32 3.0, %v1416
    %1418 = vmatmul.f32.gmra.mxu0 %v1391
    %v1419 = vpop.f32.mrf.mxu0
    %v1420 = vadd.f32 3.0, %v1419
    %1421 = vmatmul.f32.gmra.mxu0 %v1394
    %v1422 = vpop.f32.mrf.mxu0
    %v1423 = vadd.f32 3.0, %v1422
    %1424 = vmatmul.f32.gmra.mxu0 %v1397
    %v1425 = vpop.f32.mrf.mxu0
    %v1426 = vadd.f32 3.0, %v1425
    %1427 = vdwg.mxu0
    %v1428 = vmax.f32 %v1417, 0.0
    %v1429 = vmax.f32 %v1420, 0.0
    %v1430 = vmax.f32 %v1423, 0.0
    %v1431 = vmax.f32 %v1426, 0.0
    %v1432 = vmin.f32 %v1428, 6.0
    %v1433 = vmin.f32 %v1429, 6.0
    %v1434 = vmin.f32 %v1430, 6.0
    %v1435 = vmin.f32 %v1431, 6.0
    %v1436 = vmul.f32 %v1432, 0.16666667
    %v1437 = vmul.f32 %v1433, 0.16666667
    %v1438 = vmul.f32 %v1434, 0.16666667
    %v1439 = vmul.f32 %v1435, 0.16666667
    %1441 = vset.pattern.permute.xlu0 0
    %1442 = vperm.xlu0 %1441, %v1436
    %v1443 = vpop.permute.xlu0 %1442
    %1446 = vset.pattern.permute.xlu0 0
    %1447 = vperm.xlu0 %1446, %v1437
    %v1448 = vpop.permute.xlu0 %1447
    %1451 = vset.pattern.permute.xlu0 0
    %1452 = vperm.xlu0 %1451, %v1438
    %v1453 = vpop.permute.xlu0 %1452
    %1456 = vset.pattern.permute.xlu0 0
    %1457 = vperm.xlu0 %1456, %v1439
    %v1458 = vpop.permute.xlu0 %1457
    %v1460 = vmul.f32 %v1301, %v1443
    %v1461 = vmul.f32 %v1302, %v1443
    %v1462 = vmul.f32 %v1305, %v1448
    %v1463 = vmul.f32 %v1306, %v1448
    %v1464 = vmul.f32 %v1309, %v1453
    %v1465 = vmul.f32 %v1310, %v1453
    %v1466 = vmul.f32 %v1313, %v1458
    %v1467 = vmul.f32 %v1314, %v1458
    %1468 = vset.pattern.permute.xlu0 1
    %1469 = vperm.xlu0 %1468, %v1436
    %v1470 = vpop.permute.xlu0 %1469
    %1472 = vset.pattern.permute.xlu0 1
    %1473 = vperm.xlu0 %1472, %v1437
    %v1474 = vpop.permute.xlu0 %1473
    %1476 = vset.pattern.permute.xlu0 1
    %1477 = vperm.xlu0 %1476, %v1438
    %v1478 = vpop.permute.xlu0 %1477
    %1480 = vset.pattern.permute.xlu0 1
    %1481 = vperm.xlu0 %1480, %v1439
    %v1482 = vpop.permute.xlu0 %1481
    %v1484 = vmul.f32 %v1303, %v1470
    %v1485 = vmul.f32 %v1304, %v1470
    %v1486 = vmul.f32 %v1307, %v1474
    %v1487 = vmul.f32 %v1308, %v1474
    %v1488 = vmul.f32 %v1311, %v1478
    %v1489 = vmul.f32 %v1312, %v1478
    %v1490 = vmul.f32 %v1315, %v1482
    %v1491 = vmul.f32 %v1316, %v1482
    %v1492 = vadd.f32 %v1460, 3.0
    %v1493 = vadd.f32 %v1461, 3.0
    %v1494 = vadd.f32 %v1484, 3.0
    %v1495 = vadd.f32 %v1485, 3.0
    %v1496 = vadd.f32 %v1462, 3.0
    %v1497 = vadd.f32 %v1463, 3.0
    %v1498 = vadd.f32 %v1486, 3.0
    %v1499 = vadd.f32 %v1487, 3.0
    %v1500 = vadd.f32 %v1464, 3.0
    %v1501 = vadd.f32 %v1465, 3.0
    %v1502 = vadd.f32 %v1488, 3.0
    %v1503 = vadd.f32 %v1489, 3.0
    %v1504 = vadd.f32 %v1466, 3.0
    %v1505 = vadd.f32 %v1467, 3.0
    %v1506 = vadd.f32 %v1490, 3.0
    %v1507 = vadd.f32 %v1491, 3.0
    %v1508 = vmax.f32 %v1492, 0.0
    %v1509 = vmax.f32 %v1493, 0.0
    %v1510 = vmax.f32 %v1494, 0.0
    %v1511 = vmax.f32 %v1495, 0.0
    %v1512 = vmax.f32 %v1496, 0.0
    %v1513 = vmax.f32 %v1497, 0.0
    %v1514 = vmax.f32 %v1498, 0.0
    %v1515 = vmax.f32 %v1499, 0.0
    %v1516 = vmax.f32 %v1500, 0.0
    %v1517 = vmax.f32 %v1501, 0.0
    %v1518 = vmax.f32 %v1502, 0.0
    %v1519 = vmax.f32 %v1503, 0.0
    %v1520 = vmax.f32 %v1504, 0.0
    %v1521 = vmax.f32 %v1505, 0.0
    %v1522 = vmax.f32 %v1506, 0.0
    %v1523 = vmax.f32 %v1507, 0.0
    %v1524 = vmin.f32 %v1508, 6.0
    %v1525 = vmin.f32 %v1509, 6.0
    %v1526 = vmin.f32 %v1510, 6.0
    %v1527 = vmin.f32 %v1511, 6.0
    %v1528 = vmin.f32 %v1512, 6.0
    %v1529 = vmin.f32 %v1513, 6.0
    %v1530 = vmin.f32 %v1514, 6.0
    %v1531 = vmin.f32 %v1515, 6.0
    %v1532 = vmin.f32 %v1516, 6.0
    %v1533 = vmin.f32 %v1517, 6.0
    %v1534 = vmin.f32 %v1518, 6.0
    %v1535 = vmin.f32 %v1519, 6.0
    %v1536 = vmin.f32 %v1520, 6.0
    %v1537 = vmin.f32 %v1521, 6.0
    %v1538 = vmin.f32 %v1522, 6.0
    %v1539 = vmin.f32 %v1523, 6.0
    %v1540 = vmul.f32 %v1460, %v1524
    %v1541 = vmul.f32 %v1461, %v1525
    %v1542 = vmul.f32 %v1484, %v1526
    %v1543 = vmul.f32 %v1485, %v1527
    %v1544 = vmul.f32 %v1462, %v1528
    %v1545 = vmul.f32 %v1463, %v1529
    %v1546 = vmul.f32 %v1486, %v1530
    %v1547 = vmul.f32 %v1487, %v1531
    %v1548 = vmul.f32 %v1464, %v1532
    %v1549 = vmul.f32 %v1465, %v1533
    %v1550 = vmul.f32 %v1488, %v1534
    %v1551 = vmul.f32 %v1489, %v1535
    %v1552 = vmul.f32 %v1466, %v1536
    %v1553 = vmul.f32 %v1467, %v1537
    %v1554 = vmul.f32 %v1490, %v1538
    %v1555 = vmul.f32 %v1491, %v1539
    %1556 = vset.pattern.permute.xlu0 2
    %1557 = vperm.xlu0 %1556, %v39
    %v1558 = vpop.permute.xlu0 %1557
    %1560 = vset.pattern.permute.xlu0 2
    %1561 = vperm.xlu0 %1560, %v40
    %v1562 = vpop.permute.xlu0 %1561
    %v1565 = vsel %vm1361, %v37, 0
    %v1568 = vsel %vm1361, %v38, 0
    %1570 = vmatpush.msra.mxu0 0.0
    %1571 = vmatpush.msra.mxu0 0.0
    %1572 = vmatpush.msra.mxu0 0.0
    %1573 = vmatpush.msra.mxu0 0.0
    %1574 = vmatpush.msra.mxu0 0.0
    %1575 = vmatpush.msra.mxu0 0.0
    %1576 = vmatpush.msra.mxu0 0.0
    %1577 = vmatpush.msra.mxu0 0.0
    %1578 = vmatpush.msra.mxu0 0.0
    %1579 = vmatpush.msra.mxu0 0.0
    %1580 = vmatpush.msra.mxu0 0.0
    %1581 = vmatpush.msra.mxu0 0.0
    %1582 = vmatpush.msra.mxu0 %v1552
    %1583 = vmatpush.msra.mxu0 %v1548
    %1584 = vmatpush.msra.mxu0 %v1544
    %1585 = vmatpush.msra.mxu0 %v1540
    %1586 = vmatmul.f32.gmra.mxu0 %v1565
    %v1587 = vpop.f32.mrf.mxu0
    %v1588 = vadd.f32 %v1558, %v1587
    %1589 = vmatmul.f32.gmra.mxu0 %v1568
    %v1590 = vpop.f32.mrf.mxu0
    %v1591 = vadd.f32 %v1562, %v1590
    %1592 = vdwg.mxu0
    %1593 = vmatpush.msra.mxu0 0.0
    %1594 = vmatpush.msra.mxu0 0.0
    %1595 = vmatpush.msra.mxu0 0.0
    %1596 = vmatpush.msra.mxu0 0.0
    %1597 = vmatpush.msra.mxu0 0.0
    %1598 = vmatpush.msra.mxu0 0.0
    %1599 = vmatpush.msra.mxu0 0.0
    %1600 = vmatpush.msra.mxu0 0.0
    %1601 = vmatpush.msra.mxu0 0.0
    %1602 = vmatpush.msra.mxu0 0.0
    %1603 = vmatpush.msra.mxu0 0.0
    %1604 = vmatpush.msra.mxu0 0.0
    %1605 = vmatpush.msra.mxu0 %v1553
    %1606 = vmatpush.msra.mxu0 %v1549
    %1607 = vmatpush.msra.mxu0 %v1545
    %1608 = vmatpush.msra.mxu0 %v1541
    %1609 = vmatmul.f32.gmra.mxu0 %v1565
    %v1610 = vpop.f32.mrf.mxu0
    %v1611 = vadd.f32 %v1558, %v1610
    %1612 = vmatmul.f32.gmra.mxu0 %v1568
    %v1613 = vpop.f32.mrf.mxu0
    %v1614 = vadd.f32 %v1562, %v1613
    %1615 = vdwg.mxu0
    %1616 = vmatpush.msra.mxu0 0.0
    %1617 = vmatpush.msra.mxu0 0.0
    %1618 = vmatpush.msra.mxu0 0.0
    %1619 = vmatpush.msra.mxu0 0.0
    %1620 = vmatpush.msra.mxu0 0.0
    %1621 = vmatpush.msra.mxu0 0.0
    %1622 = vmatpush.msra.mxu0 0.0
    %1623 = vmatpush.msra.mxu0 0.0
    %1624 = vmatpush.msra.mxu0 0.0
    %1625 = vmatpush.msra.mxu0 0.0
    %1626 = vmatpush.msra.mxu0 0.0
    %1627 = vmatpush.msra.mxu0 0.0
    %1628 = vmatpush.msra.mxu0 %v1554
    %1629 = vmatpush.msra.mxu0 %v1550
    %1630 = vmatpush.msra.mxu0 %v1546
    %1631 = vmatpush.msra.mxu0 %v1542
    %1632 = vmatmul.f32.gmra.mxu0 %v1565
    %v1633 = vpop.f32.mrf.mxu0
    %v1634 = vadd.f32 %v1558, %v1633
    %1635 = vmatmul.f32.gmra.mxu0 %v1568
    %v1636 = vpop.f32.mrf.mxu0
    %v1637 = vadd.f32 %v1562, %v1636
    %1638 = vdwg.mxu0
    %1639 = vmatpush.msra.mxu0 0.0
    %1640 = vmatpush.msra.mxu0 0.0
    %1641 = vmatpush.msra.mxu0 0.0
    %1642 = vmatpush.msra.mxu0 0.0
    %1643 = vmatpush.msra.mxu0 0.0
    %1644 = vmatpush.msra.mxu0 0.0
    %1645 = vmatpush.msra.mxu0 0.0
    %1646 = vmatpush.msra.mxu0 0.0
    %1647 = vmatpush.msra.mxu0 0.0
    %1648 = vmatpush.msra.mxu0 0.0
    %1649 = vmatpush.msra.mxu0 0.0
    %1650 = vmatpush.msra.mxu0 0.0
    %1651 = vmatpush.msra.mxu0 %v1555
    %1652 = vmatpush.msra.mxu0 %v1551
    %1653 = vmatpush.msra.mxu0 %v1547
    %1654 = vmatpush.msra.mxu0 %v1543
    %1655 = vmatmul.f32.gmra.mxu0 %v1565
    %v1656 = vpop.f32.mrf.mxu0
    %v1657 = vadd.f32 %v1558, %v1656
    %1658 = vmatmul.f32.gmra.mxu0 %v1568
    %v1659 = vpop.f32.mrf.mxu0
    %v1660 = vadd.f32 %v1562, %v1659
    %1661 = vdwg.mxu0
    %v1662 = vadd.f32 %v1588, %v15
    %v1663 = vadd.f32 %v1611, %v16
    %v1664 = vadd.f32 %v1634, %v20
    %v1665 = vadd.f32 %v1657, %v21
    %v1666 = vadd.f32 %v1591, %v17
    %v1667 = vadd.f32 %v1614, %v18
    %v1668 = vadd.f32 %v1637, %v22
    %v1669 = vadd.f32 %v1660, %v23
    %1670 = vst [vmem:[#allocation2] sm:$0xff] %v1662
    %1671 = vst [vmem:[#allocation2 + $0x8] sm:$0xff] %v1663
    %1672 = vst [vmem:[#allocation2 + $0x10] sm:$0xff] %v1666
    %1673 = vst [vmem:[#allocation2 + $0x18] sm:$0xff] %v1667
    %s1674 = scalar_lea.vmem [#allocation2], 32
    %1675 = vst [vmem:[%s1674] sm:$0xff] %v1664
    %1676 = vst [vmem:[%s1674 + $0x8] sm:$0xff] %v1665
    %1677 = vst [vmem:[%s1674 + $0x10] sm:$0xff] %v1668
    %1678 = vst [vmem:[%s1674 + $0x18] sm:$0xff] %v1669
    // Predicated region
    $region14: #{tpu_custom_call.1} parent=1 // pred_check
      _
    $region15: #{tpu_custom_call.1} parent=1 // pred_check_branch
      %1680 = sbr.rel (0) target = $region17
    $region16: #{tpu_custom_call.1} parent=1 // pred_region
      %1682 = vsyncadd [#allocation3], 0
      %s1683 = sshll.u32 [#allocation2], 4
      %s1684 = int_to_ptr.vmem [resolvable:$true] %s1683
      %s1685 = sshll.u32 %s3, 4
      %s1686 = int_to_ptr.hbm [resolvable:$true] %s1685
      %1691 = dma.vmem_to_hbm [thread:$0]  %s1684, 1024, %s1686, [#allocation3], 256, 256, 16
    $region17: #{tpu_custom_call.1} parent=1 // pred_fallthru
      _
    // Predicated region
    $region18: #{tpu_custom_call.1} parent=1 // pred_check
      _
    $region19: #{tpu_custom_call.1} parent=1 // pred_check_branch
      %1693 = sbr.rel (0) target = $region21
    $region20: #{tpu_custom_call.1} parent=1 // pred_region
      %1695 = dma.done [#allocation3], 1024
    $region21: #{tpu_custom_call.1} parent=1 // pred_fallthru
      _
    %1696 = vsyncpa [#allocation3], 1

</llo_original>
